<compile_context>
chip_gen: v5e
topology: v5e:2x2
jax: 0.10.0
libtpu: 0.0.40
codegen_flags: <defaults>
</compile_context>

<pallas_src>
import jax
import jax.numpy as jnp
from jax.experimental import pallas as pl
from jax.experimental.pallas import tpu as pltpu

C_IN, C_OUT, K = 3, 8, 3
H_IN, W_IN = 32, 32
PAD = 2
H_OUT = (H_IN - 1) - 2 * PAD + K   # 30
W_OUT = (W_IN - 1) - 2 * PAD + K   # 30
N_PIX = H_IN * W_IN                # 1024 (lane-dense, multiple of 128)
KK = K * K                         # 9 taps
N_PIX_PAD = N_PIX + 128            # 1152: zero-padded lanes so tap windows never read OOB

# Flat-pixel offset of each conv tap.  Valid for THIS geometry only:
#   * no row wrap:   ow + kw <= (W_OUT-1) + (K-1) < W_IN for every valid output pixel
#   * no col overrun: oh + kh <= (H_OUT-1) + (K-1) < H_IN
# so x_flat[p + off] == x[oh+kh, ow+kw] exactly on the 30x30 crop window; anything the
# windows read from the zero pad lands outside the crop and is discarded.
TAP_OFFSETS = tuple(kh * W_IN + kw for kh in range(K) for kw in range(K))
assert W_OUT + K - 1 <= W_IN and H_OUT + K - 1 <= H_IN, "tap-offset trick needs this geometry"
assert max(TAP_OFFSETS) <= N_PIX_PAD - N_PIX, "lane pad must cover the largest tap offset"
assert max(TAP_OFFSETS) < 128, "window offsets must stay inside the first 128-lane tile"


def convt_relu_sigmoid_kernel(x_ref, w_ref, b_ref, o_ref):
    """Per-image fused transposed-conv (as a valid conv) + bias + ReLU + sigmoid.

    x_ref: (C_IN, N_PIX_PAD) f32  -- flattened 32x32 image, lane-zero-padded to 1152
    w_ref: (KK, C_OUT, C_IN) f32  -- per-tap flipped/transposed weights
    b_ref: (C_OUT, 1)        f32
    o_ref: (C_OUT, N_PIX)    f32  -- flattened 32x32-aligned output (cropped in wrapper)
    """
    acc = jnp.zeros((C_OUT, N_PIX), jnp.float32)
    for t, off in enumerate(TAP_OFFSETS):
        # In-kernel im2col: tap-shifted view of the image realized as a static
        # lane-window load (off < 128; the don't-care tail reads the zero pad).
        x_t = x_ref[:, pl.ds(off, N_PIX)]                         # (C_IN, N_PIX)
        acc = acc + jnp.dot(w_ref[t], x_t,
                            preferred_element_type=jnp.float32)   # (C_OUT, N_PIX)
    y = jnp.maximum(acc + b_ref[...], 0.0)                        # bias + ReLU (VPU)
    # Sigmoid; y >= 0 so exp(-y) in (0, 1].  Exact reciprocal keeps the 1e-5 tolerance.
    o_ref[...] = (pl.reciprocal(1.0 + jnp.exp(-y), approx=False)).astype(o_ref.dtype)


def prepare_params(weight, bias):
    """Hoisted weight prep (call once at init, not per forward).

    weight: (C_IN, C_OUT, K, K) PyTorch ConvTranspose2d convention.
    Returns w_taps (KK, C_OUT, C_IN) with w_taps[kh*K+kw, o, c] = weight[c, o, K-1-kh, K-1-kw]
    and bias as (C_OUT, 1).
    """
    wf = jnp.flip(weight, axis=(2, 3))                            # (C_IN, C_OUT, K, K)
    w_taps = jnp.transpose(wf, (2, 3, 1, 0)).reshape(KK, C_OUT, C_IN)
    return w_taps.astype(jnp.float32), bias.reshape(C_OUT, 1).astype(jnp.float32)


@jax.jit
def model_forward(x, w_taps, b2):
    """x: (N, C_IN, 32, 32) f32 -> (N, C_OUT, 30, 30) f32."""
    n = x.shape[0]
    # Lane-dense flatten (metadata reshape) + small zero pad on the lane axis so every
    # tap window is an in-bounds static slice.  No NCHW transposes anywhere.
    x_pad = jnp.pad(x.reshape(n, C_IN, N_PIX),
                    ((0, 0), (0, 0), (0, N_PIX_PAD - N_PIX)))

    cost = pl.CostEstimate(
        flops=2 * C_OUT * KK * C_IN * n * N_PIX,
        transcendentals=2 * C_OUT * n * N_PIX,
        bytes_accessed=4 * (n * C_IN * N_PIX_PAD + KK * C_OUT * C_IN + C_OUT
                            + n * C_OUT * N_PIX),
    )

    out = pl.pallas_call(
        convt_relu_sigmoid_kernel,
        out_shape=jax.ShapeDtypeStruct((n, C_OUT, N_PIX), jnp.float32),
        grid=(n,),
        in_specs=[
            pl.BlockSpec((None, C_IN, N_PIX_PAD), lambda i: (i, 0, 0)),   # per-image block
            pl.BlockSpec((KK, C_OUT, C_IN), lambda i: (0, 0, 0)),         # full weights
            pl.BlockSpec((C_OUT, 1), lambda i: (0, 0)),                   # bias
        ],
        out_specs=pl.BlockSpec((None, C_OUT, N_PIX), lambda i: (i, 0, 0)),
        compiler_params=pltpu.CompilerParams(
            dimension_semantics=("parallel",)),   # shards images across v7x's 2 TCs
        cost_estimate=cost,
    )(x_pad, w_taps, b2)

    # Crop the lane-dense 32x32-aligned output down to the valid 30x30 window.
    return out.reshape(n, C_OUT, H_IN, W_IN)[:, :, :H_OUT, :W_OUT]


def ref_forward(x, weight, bias):
    """Plain-JAX reference using the scatter definition of ConvTranspose2d."""
    n = x.shape[0]
    full = jnp.zeros((n, C_OUT, H_IN + K - 1, W_IN + K - 1), jnp.float32)
    for u in range(K):
        for v in range(K):
            full = full.at[:, :, u:u + H_IN, v:v + W_IN].add(
                jnp.einsum('nchw,co->nohw', x, weight[:, :, u, v]))
    out = full[:, :, PAD:PAD + H_OUT, PAD:PAD + W_OUT] + bias.reshape(1, C_OUT, 1, 1)
    return jax.nn.sigmoid(jnp.maximum(out, 0.0))


if __name__ == "__main__":
    key = jax.random.PRNGKey(0)
    k1, k2, k3 = jax.random.split(key, 3)

    # Module spec input is (1, 3, 32, 32); use a small batch of 2 to exercise the
    # per-image grid and the parallel batch axis.
    n = 2
    x = jax.random.normal(k1, (n, C_IN, H_IN, W_IN), jnp.float32)

    # Deterministic param init (PyTorch-style uniform bound = 1/sqrt(fan_in)).
    bound = 1.0 / (C_IN * K * K) ** 0.5
    weight = jax.random.uniform(k2, (C_IN, C_OUT, K, K), jnp.float32, -bound, bound)
    bias = jax.random.uniform(k3, (C_OUT,), jnp.float32, -bound, bound)

    w_taps, b2 = prepare_params(weight, bias)   # hoisted: runs once, not per call
    y = model_forward(x, w_taps, b2)
    jax.block_until_ready(y)

    assert y.shape == (n, C_OUT, H_OUT, W_OUT), y.shape
    y_ref = ref_forward(x, weight, bias)
    assert jnp.allclose(y, y_ref, atol=1e-5, rtol=1e-5)

    print("KERNEL_OK")
</pallas_src>

<mosaic_0001>
module attributes {stable_mosaic.version = 11 : i64} {
  func.func @convt_relu_sigmoid_kernel(%arg0: i32, %arg1: memref<1x3x1152xf32, #tpu.memory_space<vmem>>, %arg2: memref<9x8x3xf32, #tpu.memory_space<vmem>>, %arg3: memref<8x1xf32, #tpu.memory_space<vmem>>, %arg4: memref<1x8x1024xf32, #tpu.memory_space<vmem>>) attributes {dimension_semantics = [#tpu.dimension_semantics<parallel>], iteration_bounds = array<i64: 2>, scalar_prefetch = 0 : i64, scratch_operands = 0 : i64, tpu.core_type = #tpu.core_type<tc>, window_params = [{transform_indices = @transform_0, window_bounds = array<i64: 1, 3, 1152>}, {pipeline_mode = #tpu.pipeline_mode<synchronous>, transform_indices = @transform_1, window_bounds = array<i64: 9, 8, 3>}, {pipeline_mode = #tpu.pipeline_mode<synchronous>, transform_indices = @transform_2, window_bounds = array<i64: 8, 1>}, {transform_indices = @transform_3, window_bounds = array<i64: 1, 8, 1024>}]} {
    %cst = arith.constant 0.000000e+00 : f32
    %0 = vector.broadcast %cst : f32 to vector<8x1024xf32>
    %c0 = arith.constant 0 : index
    %c0_0 = arith.constant 0 : index
    %c0_1 = arith.constant 0 : index
    %1 = vector.load %arg1[%c0, %c0_0, %c0_1] : memref<1x3x1152xf32, #tpu.memory_space<vmem>>, vector<1x3x1024xf32>
    %2 = vector.shape_cast %1 : vector<1x3x1024xf32> to vector<3x1024xf32>
    %c0_2 = arith.constant 0 : index
    %c0_3 = arith.constant 0 : index
    %c0_4 = arith.constant 0 : index
    %3 = vector.load %arg2[%c0_2, %c0_3, %c0_4] : memref<9x8x3xf32, #tpu.memory_space<vmem>>, vector<1x8x3xf32>
    %4 = vector.shape_cast %3 : vector<1x8x3xf32> to vector<8x3xf32>
    %cst_5 = arith.constant dense<0.000000e+00> : vector<8x1024xf32>
    %5 = tpu.matmul %4, %2, %cst_5 {dimension_numbers = #tpu.dot_dimension_numbers<[1], [0], [0], [1], [0, 0, 1, 1], [], []>} : vector<8x3xf32>, vector<3x1024xf32>, vector<8x1024xf32> -> vector<8x1024xf32>
    %6 = arith.addf %0, %5 : vector<8x1024xf32>
    %c0_6 = arith.constant 0 : index
    %c0_7 = arith.constant 0 : index
    %c1 = arith.constant 1 : index
    %7 = vector.load %arg1[%c0_6, %c0_7, %c1] : memref<1x3x1152xf32, #tpu.memory_space<vmem>>, vector<1x3x1024xf32>
    %8 = vector.shape_cast %7 : vector<1x3x1024xf32> to vector<3x1024xf32>
    %c1_8 = arith.constant 1 : index
    %c0_9 = arith.constant 0 : index
    %c0_10 = arith.constant 0 : index
    %9 = vector.load %arg2[%c1_8, %c0_9, %c0_10] : memref<9x8x3xf32, #tpu.memory_space<vmem>>, vector<1x8x3xf32>
    %10 = vector.shape_cast %9 : vector<1x8x3xf32> to vector<8x3xf32>
    %cst_11 = arith.constant dense<0.000000e+00> : vector<8x1024xf32>
    %11 = tpu.matmul %10, %8, %cst_11 {dimension_numbers = #tpu.dot_dimension_numbers<[1], [0], [0], [1], [0, 0, 1, 1], [], []>} : vector<8x3xf32>, vector<3x1024xf32>, vector<8x1024xf32> -> vector<8x1024xf32>
    %12 = arith.addf %6, %11 : vector<8x1024xf32>
    %c0_12 = arith.constant 0 : index
    %c0_13 = arith.constant 0 : index
    %c2 = arith.constant 2 : index
    %13 = vector.load %arg1[%c0_12, %c0_13, %c2] : memref<1x3x1152xf32, #tpu.memory_space<vmem>>, vector<1x3x1024xf32>
    %14 = vector.shape_cast %13 : vector<1x3x1024xf32> to vector<3x1024xf32>
    %c2_14 = arith.constant 2 : index
    %c0_15 = arith.constant 0 : index
    %c0_16 = arith.constant 0 : index
    %15 = vector.load %arg2[%c2_14, %c0_15, %c0_16] : memref<9x8x3xf32, #tpu.memory_space<vmem>>, vector<1x8x3xf32>
    %16 = vector.shape_cast %15 : vector<1x8x3xf32> to vector<8x3xf32>
    %cst_17 = arith.constant dense<0.000000e+00> : vector<8x1024xf32>
    %17 = tpu.matmul %16, %14, %cst_17 {dimension_numbers = #tpu.dot_dimension_numbers<[1], [0], [0], [1], [0, 0, 1, 1], [], []>} : vector<8x3xf32>, vector<3x1024xf32>, vector<8x1024xf32> -> vector<8x1024xf32>
    %18 = arith.addf %12, %17 : vector<8x1024xf32>
    %c0_18 = arith.constant 0 : index
    %c0_19 = arith.constant 0 : index
    %c32 = arith.constant 32 : index
    %19 = vector.load %arg1[%c0_18, %c0_19, %c32] : memref<1x3x1152xf32, #tpu.memory_space<vmem>>, vector<1x3x1024xf32>
    %20 = vector.shape_cast %19 : vector<1x3x1024xf32> to vector<3x1024xf32>
    %c3 = arith.constant 3 : index
    %c0_20 = arith.constant 0 : index
    %c0_21 = arith.constant 0 : index
    %21 = vector.load %arg2[%c3, %c0_20, %c0_21] : memref<9x8x3xf32, #tpu.memory_space<vmem>>, vector<1x8x3xf32>
    %22 = vector.shape_cast %21 : vector<1x8x3xf32> to vector<8x3xf32>
    %cst_22 = arith.constant dense<0.000000e+00> : vector<8x1024xf32>
    %23 = tpu.matmul %22, %20, %cst_22 {dimension_numbers = #tpu.dot_dimension_numbers<[1], [0], [0], [1], [0, 0, 1, 1], [], []>} : vector<8x3xf32>, vector<3x1024xf32>, vector<8x1024xf32> -> vector<8x1024xf32>
    %24 = arith.addf %18, %23 : vector<8x1024xf32>
    %c0_23 = arith.constant 0 : index
    %c0_24 = arith.constant 0 : index
    %c33 = arith.constant 33 : index
    %25 = vector.load %arg1[%c0_23, %c0_24, %c33] : memref<1x3x1152xf32, #tpu.memory_space<vmem>>, vector<1x3x1024xf32>
    %26 = vector.shape_cast %25 : vector<1x3x1024xf32> to vector<3x1024xf32>
    %c4 = arith.constant 4 : index
    %c0_25 = arith.constant 0 : index
    %c0_26 = arith.constant 0 : index
    %27 = vector.load %arg2[%c4, %c0_25, %c0_26] : memref<9x8x3xf32, #tpu.memory_space<vmem>>, vector<1x8x3xf32>
    %28 = vector.shape_cast %27 : vector<1x8x3xf32> to vector<8x3xf32>
    %cst_27 = arith.constant dense<0.000000e+00> : vector<8x1024xf32>
    %29 = tpu.matmul %28, %26, %cst_27 {dimension_numbers = #tpu.dot_dimension_numbers<[1], [0], [0], [1], [0, 0, 1, 1], [], []>} : vector<8x3xf32>, vector<3x1024xf32>, vector<8x1024xf32> -> vector<8x1024xf32>
    %30 = arith.addf %24, %29 : vector<8x1024xf32>
    %c0_28 = arith.constant 0 : index
    %c0_29 = arith.constant 0 : index
    %c34 = arith.constant 34 : index
    %31 = vector.load %arg1[%c0_28, %c0_29, %c34] : memref<1x3x1152xf32, #tpu.memory_space<vmem>>, vector<1x3x1024xf32>
    %32 = vector.shape_cast %31 : vector<1x3x1024xf32> to vector<3x1024xf32>
    %c5 = arith.constant 5 : index
    %c0_30 = arith.constant 0 : index
    %c0_31 = arith.constant 0 : index
    %33 = vector.load %arg2[%c5, %c0_30, %c0_31] : memref<9x8x3xf32, #tpu.memory_space<vmem>>, vector<1x8x3xf32>
    %34 = vector.shape_cast %33 : vector<1x8x3xf32> to vector<8x3xf32>
    %cst_32 = arith.constant dense<0.000000e+00> : vector<8x1024xf32>
    %35 = tpu.matmul %34, %32, %cst_32 {dimension_numbers = #tpu.dot_dimension_numbers<[1], [0], [0], [1], [0, 0, 1, 1], [], []>} : vector<8x3xf32>, vector<3x1024xf32>, vector<8x1024xf32> -> vector<8x1024xf32>
    %36 = arith.addf %30, %35 : vector<8x1024xf32>
    %c0_33 = arith.constant 0 : index
    %c0_34 = arith.constant 0 : index
    %c64 = arith.constant 64 : index
    %37 = vector.load %arg1[%c0_33, %c0_34, %c64] : memref<1x3x1152xf32, #tpu.memory_space<vmem>>, vector<1x3x1024xf32>
    %38 = vector.shape_cast %37 : vector<1x3x1024xf32> to vector<3x1024xf32>
    %c6 = arith.constant 6 : index
    %c0_35 = arith.constant 0 : index
    %c0_36 = arith.constant 0 : index
    %39 = vector.load %arg2[%c6, %c0_35, %c0_36] : memref<9x8x3xf32, #tpu.memory_space<vmem>>, vector<1x8x3xf32>
    %40 = vector.shape_cast %39 : vector<1x8x3xf32> to vector<8x3xf32>
    %cst_37 = arith.constant dense<0.000000e+00> : vector<8x1024xf32>
    %41 = tpu.matmul %40, %38, %cst_37 {dimension_numbers = #tpu.dot_dimension_numbers<[1], [0], [0], [1], [0, 0, 1, 1], [], []>} : vector<8x3xf32>, vector<3x1024xf32>, vector<8x1024xf32> -> vector<8x1024xf32>
    %42 = arith.addf %36, %41 : vector<8x1024xf32>
    %c0_38 = arith.constant 0 : index
    %c0_39 = arith.constant 0 : index
    %c65 = arith.constant 65 : index
    %43 = vector.load %arg1[%c0_38, %c0_39, %c65] : memref<1x3x1152xf32, #tpu.memory_space<vmem>>, vector<1x3x1024xf32>
    %44 = vector.shape_cast %43 : vector<1x3x1024xf32> to vector<3x1024xf32>
    %c7 = arith.constant 7 : index
    %c0_40 = arith.constant 0 : index
    %c0_41 = arith.constant 0 : index
    %45 = vector.load %arg2[%c7, %c0_40, %c0_41] : memref<9x8x3xf32, #tpu.memory_space<vmem>>, vector<1x8x3xf32>
    %46 = vector.shape_cast %45 : vector<1x8x3xf32> to vector<8x3xf32>
    %cst_42 = arith.constant dense<0.000000e+00> : vector<8x1024xf32>
    %47 = tpu.matmul %46, %44, %cst_42 {dimension_numbers = #tpu.dot_dimension_numbers<[1], [0], [0], [1], [0, 0, 1, 1], [], []>} : vector<8x3xf32>, vector<3x1024xf32>, vector<8x1024xf32> -> vector<8x1024xf32>
    %48 = arith.addf %42, %47 : vector<8x1024xf32>
    %c0_43 = arith.constant 0 : index
    %c0_44 = arith.constant 0 : index
    %c66 = arith.constant 66 : index
    %49 = vector.load %arg1[%c0_43, %c0_44, %c66] : memref<1x3x1152xf32, #tpu.memory_space<vmem>>, vector<1x3x1024xf32>
    %50 = vector.shape_cast %49 : vector<1x3x1024xf32> to vector<3x1024xf32>
    %c8 = arith.constant 8 : index
    %c0_45 = arith.constant 0 : index
    %c0_46 = arith.constant 0 : index
    %51 = vector.load %arg2[%c8, %c0_45, %c0_46] : memref<9x8x3xf32, #tpu.memory_space<vmem>>, vector<1x8x3xf32>
    %52 = vector.shape_cast %51 : vector<1x8x3xf32> to vector<8x3xf32>
    %cst_47 = arith.constant dense<0.000000e+00> : vector<8x1024xf32>
    %53 = tpu.matmul %52, %50, %cst_47 {dimension_numbers = #tpu.dot_dimension_numbers<[1], [0], [0], [1], [0, 0, 1, 1], [], []>} : vector<8x3xf32>, vector<3x1024xf32>, vector<8x1024xf32> -> vector<8x1024xf32>
    %54 = arith.addf %48, %53 : vector<8x1024xf32>
    %c0_48 = arith.constant 0 : index
    %c0_49 = arith.constant 0 : index
    %55 = vector.load %arg3[%c0_48, %c0_49] : memref<8x1xf32, #tpu.memory_space<vmem>>, vector<8x1xf32>
    %56 = vector.broadcast %55 : vector<8x1xf32> to vector<8x1024xf32>
    %57 = arith.addf %54, %56 : vector<8x1024xf32>
    %cst_50 = arith.constant 0.000000e+00 : f32
    %58 = vector.broadcast %cst_50 : f32 to vector<8x1024xf32>
    %59 = arith.maximumf %57, %58 : vector<8x1024xf32>
    %cst_51 = arith.constant 0.000000e+00 : f32
    %60 = vector.broadcast %cst_51 : f32 to vector<8x1024xf32>
    %61 = arith.subf %60, %59 : vector<8x1024xf32>
    %62 = math.exp %61 : vector<8x1024xf32>
    %cst_52 = arith.constant 1.000000e+00 : f32
    %63 = vector.broadcast %cst_52 : f32 to vector<8x1024xf32>
    %64 = arith.addf %63, %62 : vector<8x1024xf32>
    %65 = tpu.reciprocal %64 : vector<8x1024xf32> -> vector<8x1024xf32>
    %c0_53 = arith.constant 0 : index
    %c0_54 = arith.constant 0 : index
    %c0_55 = arith.constant 0 : index
    %66 = vector.load %arg4[%c0_53, %c0_54, %c0_55] : memref<1x8x1024xf32, #tpu.memory_space<vmem>>, vector<1x8x1024xf32>
    %67 = vector.shape_cast %66 : vector<1x8x1024xf32> to vector<8x1024xf32>
    %68 = vector.shape_cast %65 : vector<8x1024xf32> to vector<1x8x1024xf32>
    tpu.vector_store %arg4[%c0_53, %c0_54, %c0_55], %68 {strides = array<i32>} : memref<1x8x1024xf32, #tpu.memory_space<vmem>>, vector<1x8x1024xf32>,
    return
  }
  func.func @transform_0(%arg0: i32) -> (i32, i32, i32) {
    %c0_i32 = arith.constant 0 : i32
    %c0_i32_0 = arith.constant 0 : i32
    %c0_i32_1 = arith.constant 0 : i32
    return %arg0, %c0_i32, %c0_i32_0 : i32, i32, i32
  }
  func.func @transform_1(%arg0: i32) -> (i32, i32, i32) {
    %c0_i32 = arith.constant 0 : i32
    %c0_i32_0 = arith.constant 0 : i32
    %c0_i32_1 = arith.constant 0 : i32
    %c0_i32_2 = arith.constant 0 : i32
    return %c0_i32, %c0_i32_0, %c0_i32_1 : i32, i32, i32
  }
  func.func @transform_2(%arg0: i32) -> (i32, i32) {
    %c0_i32 = arith.constant 0 : i32
    %c0_i32_0 = arith.constant 0 : i32
    %c0_i32_1 = arith.constant 0 : i32
    return %c0_i32, %c0_i32_0 : i32, i32
  }
  func.func @transform_3(%arg0: i32) -> (i32, i32, i32) {
    %c0_i32 = arith.constant 0 : i32
    %c0_i32_0 = arith.constant 0 : i32
    %c0_i32_1 = arith.constant 0 : i32
    return %arg0, %c0_i32, %c0_i32_0 : i32, i32, i32
  }
}

</mosaic_0001>

<llo_original>
// kernel: model_forward.1
$region0: #{model_forward.1}
  #allocation0 [shape = 'u32[]', space=smem, size = 0x4, offset = 0x4, fixed_abs, tag = 'smem constant byte address 0x4 - core index']
  #allocation1 [shape = 'u32[72,128]{1,0:T(1,128)}', space=vmem, size = 0x9000, scoped, tag = 'internal scratch']
  %s0 = inlined_call_operand.vmem [shape: f32[2,3,1152], index: 0, kind: input, shape index: {}]
  %s1 = inlined_call_operand.vmem [shape: f32[9,8,3], index: 1, kind: input, shape index: {}]
  %s2 = inlined_call_operand.vmem [shape: f32[8,1], index: 2, kind: input, shape index: {}]
  %s3 = inlined_call_operand.vmem [shape: f32[2,8,1024], index: 3, kind: output, shape index: {}]
  %s4 = sld [smem:[#allocation0]]
  $region45: #{model_forward.1} parent=0
    _
  %s6 = ssub.s32 1, %s4
  %s7 = scalar_select 0, %s6, %s4
  loop: start=0, step=1, limit=4
  $region2: #{model_forward.1} parent=0 // loop_pre_header
    _
  $region3: #{model_forward.1} parent=0 // loop_header
    %s9 = sphi 0, %s13
    %p10 = scmp.ge.s32.totalorder %s9, 4
    %s19 = sphi 0, %s21
    %s22 = sphi 0, %s19
    %s23 = sphi 0, %s22
    %s39 = sphi 0, %s23
    %s43 = sphi 0, %s43
    %s45 = sphi 0, %s43
    %s46 = sphi 0, %s45
    %s60 = sphi 0, %s46
    %s64 = sphi 0, %s64
    %s66 = sphi 0, %s64
    %s67 = sphi 0, %s66
    %s81 = sphi 0, %s67
    %s87 = sphi 0, %s89
    %s90 = sphi 0, %s87
    %s91 = sphi 0, %s90
    %s107 = sphi 0, %s91
  $region4: #{model_forward.1} parent=0 // loop_header_branch
    %12 = sbr.rel (%p10) target = $region8
  $region5: #{model_forward.1} parent=0 // loop_body
    %s14 = ssub.s32 %s9, 1
    %s15 = ssub.s32 %s9, 2
    %s16 = sadd.s32 %s9, 1
    %s17 = ssub.s32 %s9, %s16
    %p18 = scmp.eq.s32.totalorder %s17, 0
    %s20 = sadd.s32 %s19, 1
    %s21 = scalar_select %p18, %s19, %s20
    %p24 = pneg %p18
    %p25 = scmp.eq.s32.totalorder %s9, 1
    %p26 = por %p24, %p25
    %p27 = scmp.ne.s32.totalorder %s19, %s22
    %p28 = scmp.eq.s32.totalorder %s9, 0
    %p29 = por %p27, %p28
    %p30 = scmp.ne.s32.totalorder %s19, %s22
    %p31 = scmp.eq.s32.totalorder %s14, 1
    %p32 = por %p30, %p31
    %p33 = scmp.ne.s32.totalorder %s22, %s23
    %p34 = scmp.eq.s32.totalorder %s14, 0
    %p35 = por %p33, %p34
    %p36 = scmp.ne.s32.totalorder %s22, %s23
    %p37 = scmp.eq.s32.totalorder %s15, 1
    %p38 = por %p36, %p37
    %p40 = scmp.ne.s32.totalorder %s23, %s39
    %p41 = scmp.eq.s32.totalorder %s15, 0
    %p42 = por %p40, %p41
    %s44 = sadd.s32 %s43, 1
    %p47 = scmp.eq.s32.totalorder %s9, 1
    %p48 = scmp.ne.s32.totalorder %s43, %s45
    %p49 = scmp.eq.s32.totalorder %s9, 0
    %p50 = por %p48, %p49
    %p51 = scmp.ne.s32.totalorder %s43, %s45
    %p52 = scmp.eq.s32.totalorder %s14, 1
    %p53 = por %p51, %p52
    %p54 = scmp.ne.s32.totalorder %s45, %s46
    %p55 = scmp.eq.s32.totalorder %s14, 0
    %p56 = por %p54, %p55
    %p57 = scmp.ne.s32.totalorder %s45, %s46
    %p58 = scmp.eq.s32.totalorder %s15, 1
    %p59 = por %p57, %p58
    %p61 = scmp.ne.s32.totalorder %s46, %s60
    %p62 = scmp.eq.s32.totalorder %s15, 0
    %p63 = por %p61, %p62
    %s65 = sadd.s32 %s64, 1
    %p68 = scmp.eq.s32.totalorder %s9, 1
    %p69 = scmp.ne.s32.totalorder %s64, %s66
    %p70 = scmp.eq.s32.totalorder %s9, 0
    %p71 = por %p69, %p70
    %p72 = scmp.ne.s32.totalorder %s64, %s66
    %p73 = scmp.eq.s32.totalorder %s14, 1
    %p74 = por %p72, %p73
    %p75 = scmp.ne.s32.totalorder %s66, %s67
    %p76 = scmp.eq.s32.totalorder %s14, 0
    %p77 = por %p75, %p76
    %p78 = scmp.ne.s32.totalorder %s66, %s67
    %p79 = scmp.eq.s32.totalorder %s15, 1
    %p80 = por %p78, %p79
    %p82 = scmp.ne.s32.totalorder %s67, %s81
    %p83 = scmp.eq.s32.totalorder %s15, 0
    %p84 = por %p82, %p83
    %s85 = ssub.s32 %s9, %s16
    %p86 = scmp.eq.s32.totalorder %s85, 0
    %s88 = sadd.s32 %s87, 1
    %s89 = scalar_select %p86, %s87, %s88
    %p92 = pneg %p86
    %p93 = scmp.eq.s32.totalorder %s9, 1
    %p94 = por %p92, %p93
    %p95 = scmp.ne.s32.totalorder %s87, %s90
    %p96 = scmp.eq.s32.totalorder %s9, 0
    %p97 = por %p95, %p96
    %p98 = scmp.ne.s32.totalorder %s87, %s90
    %p99 = scmp.eq.s32.totalorder %s14, 1
    %p100 = por %p98, %p99
    %p101 = scmp.ne.s32.totalorder %s90, %s91
    %p102 = scmp.eq.s32.totalorder %s14, 0
    %p103 = por %p101, %p102
    %p104 = scmp.ne.s32.totalorder %s90, %s91
    %p105 = scmp.eq.s32.totalorder %s15, 1
    %p106 = por %p104, %p105
    %p108 = scmp.ne.s32.totalorder %s91, %s107
    %p109 = scmp.eq.s32.totalorder %s15, 0
    %p110 = por %p108, %p109
    %p111 = scmp.le.s32.totalorder 1, %s9
    %p112 = scmp.lt.s32.totalorder %s9, 3
    %p113 = pnand %p111, %p112
    %p114 = pneg %p113
    // Predicated region
    $region9: #{model_forward.1} parent=5 // pred_check
      _
    $region10: #{model_forward.1} parent=5 // pred_check_branch
      %116 = sbr.rel (%p113) target = $region12
    $region11: #{model_forward.1} parent=5 // pred_region
      %s117 = ssub.s32 %s9, 1
      // Predicated region
      $region13: #{model_forward.1} parent=11 // pred_check
        %p118 = pneg %p56
      $region14: #{model_forward.1} parent=11 // pred_check_branch
        %120 = sbr.rel (%p118) target = $region16
      $region15: #{model_forward.1} parent=11 // pred_region
        _
      $region16: #{model_forward.1} parent=11 // pred_fallthru
        _
      // Predicated region
      $region17: #{model_forward.1} parent=11 // pred_check
        %p121 = pneg %p77
      $region18: #{model_forward.1} parent=11 // pred_check_branch
        %123 = sbr.rel (%p121) target = $region20
      $region19: #{model_forward.1} parent=11 // pred_region
        _
      $region20: #{model_forward.1} parent=11 // pred_fallthru
        _
    $region12: #{model_forward.1} parent=5 // pred_fallthru
      _
    %p124 = scmp.lt.s32.totalorder %s9, 2
    // Predicated region
    $region21: #{model_forward.1} parent=5 // pred_check
      %p125 = pneg %p124
    $region22: #{model_forward.1} parent=5 // pred_check_branch
      %127 = sbr.rel (%p125) target = $region24
    $region23: #{model_forward.1} parent=5 // pred_region
      // Predicated region
      $region25: #{model_forward.1} parent=23 // pred_check
        %p128 = pneg %p29
      $region26: #{model_forward.1} parent=23 // pred_check_branch
        %130 = sbr.rel (%p128) target = $region28
      $region27: #{model_forward.1} parent=23 // pred_region
        %p131 = scmp.lt.s32.totalorder %s9, 1
        %s132 = scalar_select %p131, %s9, 1
        %s133 = smul.addr %s132, 9
        %s134 = smul.addr %s133, 4
        %s135 = scalar_lea.vmem %s0, %s134
      $region28: #{model_forward.1} parent=23 // pred_fallthru
        _
    $region24: #{model_forward.1} parent=5 // pred_fallthru
      _
    %p136 = scmp.le.s32.totalorder 1, %s9
    %p137 = scmp.lt.s32.totalorder %s9, 3
    %p138 = pnand %p136, %p137
    %p139 = pneg %p138
    // Predicated region
    $region29: #{model_forward.1} parent=5 // pred_check
      _
    $region30: #{model_forward.1} parent=5 // pred_check_branch
      %141 = sbr.rel (%p138) target = $region32
    $region31: #{model_forward.1} parent=5 // pred_region
      %s142 = ssub.s32 %s9, 1
      %p143 = scmp.lt.s32.totalorder %s14, 1
      %s144 = scalar_select %p143, %s14, 1
      %s145 = smul.addr %s144, 9
      %s146 = smul.addr %s145, 4
      %s147 = scalar_lea.vmem %s0, %s146
      %p148 = pneg %p35
      %p149 = pneg %p32
      %p150 = pneg %p56
      %p151 = pneg %p53
      %p152 = pneg %p77
      %p153 = pneg %p74
      %p154 = pneg %p103
      %p155 = pneg %p100
      %p156 = scmp.lt.s32.totalorder %s14, 1
      %s157 = scalar_select %p156, %s14, 1
      %s158 = smul.addr %s157, 8
      %s159 = smul.addr %s158, 8
      %s160 = scalar_lea.vmem %s3, %s159
      %p161 = scmp.lt.s32.totalorder %s14, 1
      %s162 = scalar_select %p161, %s14, 1
      %s163 = smul.addr %s162, 9
      %s164 = smul.addr %s163, 4
      %s165 = scalar_lea.vmem %s0, %s164
      %p166 = scmp.lt.s32.totalorder %s14, 1
      %s167 = scalar_select %p166, %s14, 1
      %s168 = smul.addr %s167, 8
      %s169 = smul.addr %s168, 8
      %s170 = scalar_lea.vmem %s3, %s169
      %v171 = vld [vmem:[%s165] sm:$0x77]
      %v172 = vld [vmem:[%s165 + $0x8] sm:$0x77]
      %v173 = vld [vmem:[%s165 + $0x10] sm:$0x77]
      %v174 = vld [vmem:[%s165 + $0x18] sm:$0x77]
      %v175 = vld [vmem:[%s1] sm:$0xff]
      %v176 = vld [vmem:[%s165 + $0x20] sm:$0x7]
      %s177 = scalar_lea.vmem %s1, 8
      %v178 = vld [vmem:[%s177] sm:$0xff]
      %184 = vst [vmem:[#allocation1] ss:$2 sm:$0xff] %v171
      %s185 = scalar_lea.vmem [#allocation1], 16
      %186 = vst [vmem:[%s185] ss:$2 sm:$0xff] %v172
      %s187 = scalar_lea.vmem [#allocation1], 32
      %188 = vst [vmem:[%s187] ss:$2 sm:$0xff] %v173
      %s189 = scalar_lea.vmem [#allocation1], 48
      %190 = vst [vmem:[%s189] ss:$2 sm:$0xff] %v174
      %v191 = vld.sshfl [vmem:[#allocation1] sm:$0xff pattern:$0x75316420]
      %v192 = vld.sshfl [vmem:[#allocation1 + $0x8] sm:$0xff pattern:$0x75316420]
      %v193 = vld.sshfl [vmem:[#allocation1 + $0x10] sm:$0xff pattern:$0x75316420]
      %v194 = vld.sshfl [vmem:[#allocation1 + $0x18] sm:$0xff pattern:$0x75316420]
      %v195 = vld.sshfl [vmem:[#allocation1 + $0x20] sm:$0xff pattern:$0x75316420]
      %v196 = vld.sshfl [vmem:[#allocation1 + $0x28] sm:$0xff pattern:$0x75316420]
      %v197 = vld.sshfl [vmem:[#allocation1 + $0x30] sm:$0xff pattern:$0x75316420]
      %v198 = vld.sshfl [vmem:[#allocation1 + $0x38] sm:$0xff pattern:$0x75316420]
      %199 = vst [vmem:[#allocation1] ss:$2 sm:$0xff] %v176
      %v200 = vld.sshfl [vmem:[#allocation1] sm:$0xff pattern:$0x75316420]
      %201 = vrot.lane.b32.xlu0 %v191, 127
      %v202 = vpop.permute.xlu0 %201
      %203 = vrot.lane.b32.xlu0 %v192, 127
      %v204 = vpop.permute.xlu0 %203
      %205 = vrot.lane.b32.xlu0 %v193, 127
      %v206 = vpop.permute.xlu0 %205
      %207 = vrot.lane.b32.xlu0 %v194, 127
      %v208 = vpop.permute.xlu0 %207
      %209 = vrot.lane.b32.xlu0 %v195, 127
      %v210 = vpop.permute.xlu0 %209
      %211 = vrot.lane.b32.xlu0 %v196, 127
      %v212 = vpop.permute.xlu0 %211
      %213 = vrot.lane.b32.xlu0 %v197, 127
      %v214 = vpop.permute.xlu0 %213
      %215 = vrot.lane.b32.xlu0 %v198, 127
      %v216 = vpop.permute.xlu0 %215
      %217 = vrot.lane.b32.xlu0 %v200, 127
      %v218 = vpop.permute.xlu0 %217
      %vm219 = vcmask 1039360
      %v220 = vsel %vm219, %v202, %v204
      %v221 = vsel %vm219, %v204, %v206
      %v222 = vsel %vm219, %v206, %v208
      %v223 = vsel %vm219, %v208, %v210
      %v224 = vsel %vm219, %v210, %v212
      %v225 = vsel %vm219, %v212, %v214
      %v226 = vsel %vm219, %v214, %v216
      %v227 = vsel %vm219, %v216, %v218
      %vm228 = vcmask 23552
      %v230 = vsel %vm228, %v178, 0
      %vm232 = vcmask 1042432
      %v233 = vsel %vm232, %v220, 0
      %v235 = vsel %vm232, %v221, 0
      %v237 = vsel %vm232, %v222, 0
      %v239 = vsel %vm232, %v223, 0
      %v241 = vsel %vm232, %v224, 0
      %v243 = vsel %vm232, %v225, 0
      %v245 = vsel %vm232, %v226, 0
      %v247 = vsel %vm232, %v227, 0
      %249 = vmatpush.msra.mxu0 0.0
      %250 = vmatpush.msra.mxu0 0.0
      %251 = vmatpush.msra.mxu0 0.0
      %252 = vmatpush.msra.mxu0 0.0
      %253 = vmatpush.msra.mxu0 0.0
      %254 = vmatpush.msra.mxu0 0.0
      %255 = vmatpush.msra.mxu0 0.0
      %256 = vmatpush.msra.mxu0 0.0
      %257 = vmatpush.msra.mxu0 0.0
      %258 = vmatpush.msra.mxu0 0.0
      %259 = vmatpush.msra.mxu0 0.0
      %260 = vmatpush.msra.mxu0 0.0
      %261 = vmatpush.msra.mxu0 0.0
      %262 = vmatpush.msra.mxu0 0.0
      %263 = vmatpush.msra.mxu0 0.0
      %264 = vmatpush.msra.mxu0 %v233
      %265 = vmatmul.f32.gmra.mxu0 %v230
      %v266 = vpop.f32.mrf.mxu0
      %v267 = vadd.f32 0.0, %v266
      %268 = vdwg.mxu0
      %269 = vmatpush.msra.mxu0 0.0
      %270 = vmatpush.msra.mxu0 0.0
      %271 = vmatpush.msra.mxu0 0.0
      %272 = vmatpush.msra.mxu0 0.0
      %273 = vmatpush.msra.mxu0 0.0
      %274 = vmatpush.msra.mxu0 0.0
      %275 = vmatpush.msra.mxu0 0.0
      %276 = vmatpush.msra.mxu0 0.0
      %277 = vmatpush.msra.mxu0 0.0
      %278 = vmatpush.msra.mxu0 0.0
      %279 = vmatpush.msra.mxu0 0.0
      %280 = vmatpush.msra.mxu0 0.0
      %281 = vmatpush.msra.mxu0 0.0
      %282 = vmatpush.msra.mxu0 0.0
      %283 = vmatpush.msra.mxu0 0.0
      %284 = vmatpush.msra.mxu0 %v235
      %285 = vmatmul.f32.gmra.mxu0 %v230
      %v286 = vpop.f32.mrf.mxu0
      %v287 = vadd.f32 0.0, %v286
      %288 = vdwg.mxu0
      %289 = vmatpush.msra.mxu0 0.0
      %290 = vmatpush.msra.mxu0 0.0
      %291 = vmatpush.msra.mxu0 0.0
      %292 = vmatpush.msra.mxu0 0.0
      %293 = vmatpush.msra.mxu0 0.0
      %294 = vmatpush.msra.mxu0 0.0
      %295 = vmatpush.msra.mxu0 0.0
      %296 = vmatpush.msra.mxu0 0.0
      %297 = vmatpush.msra.mxu0 0.0
      %298 = vmatpush.msra.mxu0 0.0
      %299 = vmatpush.msra.mxu0 0.0
      %300 = vmatpush.msra.mxu0 0.0
      %301 = vmatpush.msra.mxu0 0.0
      %302 = vmatpush.msra.mxu0 0.0
      %303 = vmatpush.msra.mxu0 0.0
      %304 = vmatpush.msra.mxu0 %v237
      %305 = vmatmul.f32.gmra.mxu0 %v230
      %v306 = vpop.f32.mrf.mxu0
      %v307 = vadd.f32 0.0, %v306
      %308 = vdwg.mxu0
      %309 = vmatpush.msra.mxu0 0.0
      %310 = vmatpush.msra.mxu0 0.0
      %311 = vmatpush.msra.mxu0 0.0
      %312 = vmatpush.msra.mxu0 0.0
      %313 = vmatpush.msra.mxu0 0.0
      %314 = vmatpush.msra.mxu0 0.0
      %315 = vmatpush.msra.mxu0 0.0
      %316 = vmatpush.msra.mxu0 0.0
      %317 = vmatpush.msra.mxu0 0.0
      %318 = vmatpush.msra.mxu0 0.0
      %319 = vmatpush.msra.mxu0 0.0
      %320 = vmatpush.msra.mxu0 0.0
      %321 = vmatpush.msra.mxu0 0.0
      %322 = vmatpush.msra.mxu0 0.0
      %323 = vmatpush.msra.mxu0 0.0
      %324 = vmatpush.msra.mxu0 %v239
      %325 = vmatmul.f32.gmra.mxu0 %v230
      %v326 = vpop.f32.mrf.mxu0
      %v327 = vadd.f32 0.0, %v326
      %328 = vdwg.mxu0
      %329 = vmatpush.msra.mxu0 0.0
      %330 = vmatpush.msra.mxu0 0.0
      %331 = vmatpush.msra.mxu0 0.0
      %332 = vmatpush.msra.mxu0 0.0
      %333 = vmatpush.msra.mxu0 0.0
      %334 = vmatpush.msra.mxu0 0.0
      %335 = vmatpush.msra.mxu0 0.0
      %336 = vmatpush.msra.mxu0 0.0
      %337 = vmatpush.msra.mxu0 0.0
      %338 = vmatpush.msra.mxu0 0.0
      %339 = vmatpush.msra.mxu0 0.0
      %340 = vmatpush.msra.mxu0 0.0
      %341 = vmatpush.msra.mxu0 0.0
      %342 = vmatpush.msra.mxu0 0.0
      %343 = vmatpush.msra.mxu0 0.0
      %344 = vmatpush.msra.mxu0 %v241
      %345 = vmatmul.f32.gmra.mxu0 %v230
      %v346 = vpop.f32.mrf.mxu0
      %v347 = vadd.f32 0.0, %v346
      %348 = vdwg.mxu0
      %349 = vmatpush.msra.mxu0 0.0
      %350 = vmatpush.msra.mxu0 0.0
      %351 = vmatpush.msra.mxu0 0.0
      %352 = vmatpush.msra.mxu0 0.0
      %353 = vmatpush.msra.mxu0 0.0
      %354 = vmatpush.msra.mxu0 0.0
      %355 = vmatpush.msra.mxu0 0.0
      %356 = vmatpush.msra.mxu0 0.0
      %357 = vmatpush.msra.mxu0 0.0
      %358 = vmatpush.msra.mxu0 0.0
      %359 = vmatpush.msra.mxu0 0.0
      %360 = vmatpush.msra.mxu0 0.0
      %361 = vmatpush.msra.mxu0 0.0
      %362 = vmatpush.msra.mxu0 0.0
      %363 = vmatpush.msra.mxu0 0.0
      %364 = vmatpush.msra.mxu0 %v243
      %365 = vmatmul.f32.gmra.mxu0 %v230
      %v366 = vpop.f32.mrf.mxu0
      %v367 = vadd.f32 0.0, %v366
      %368 = vdwg.mxu0
      %369 = vmatpush.msra.mxu0 0.0
      %370 = vmatpush.msra.mxu0 0.0
      %371 = vmatpush.msra.mxu0 0.0
      %372 = vmatpush.msra.mxu0 0.0
      %373 = vmatpush.msra.mxu0 0.0
      %374 = vmatpush.msra.mxu0 0.0
      %375 = vmatpush.msra.mxu0 0.0
      %376 = vmatpush.msra.mxu0 0.0
      %377 = vmatpush.msra.mxu0 0.0
      %378 = vmatpush.msra.mxu0 0.0
      %379 = vmatpush.msra.mxu0 0.0
      %380 = vmatpush.msra.mxu0 0.0
      %381 = vmatpush.msra.mxu0 0.0
      %382 = vmatpush.msra.mxu0 0.0
      %383 = vmatpush.msra.mxu0 0.0
      %384 = vmatpush.msra.mxu0 %v245
      %385 = vmatmul.f32.gmra.mxu0 %v230
      %v386 = vpop.f32.mrf.mxu0
      %v387 = vadd.f32 0.0, %v386
      %388 = vdwg.mxu0
      %389 = vmatpush.msra.mxu0 0.0
      %390 = vmatpush.msra.mxu0 0.0
      %391 = vmatpush.msra.mxu0 0.0
      %392 = vmatpush.msra.mxu0 0.0
      %393 = vmatpush.msra.mxu0 0.0
      %394 = vmatpush.msra.mxu0 0.0
      %395 = vmatpush.msra.mxu0 0.0
      %396 = vmatpush.msra.mxu0 0.0
      %397 = vmatpush.msra.mxu0 0.0
      %398 = vmatpush.msra.mxu0 0.0
      %399 = vmatpush.msra.mxu0 0.0
      %400 = vmatpush.msra.mxu0 0.0
      %401 = vmatpush.msra.mxu0 0.0
      %402 = vmatpush.msra.mxu0 0.0
      %403 = vmatpush.msra.mxu0 0.0
      %404 = vmatpush.msra.mxu0 %v247
      %405 = vmatmul.f32.gmra.mxu0 %v230
      %v406 = vpop.f32.mrf.mxu0
      %v407 = vadd.f32 0.0, %v406
      %408 = vdwg.mxu0
      %409 = vst [vmem:[#allocation1] ss:$2 sm:$0xff] %v171
      %s410 = scalar_lea.vmem [#allocation1], 16
      %411 = vst [vmem:[%s410] ss:$2 sm:$0xff] %v172
      %s412 = scalar_lea.vmem [#allocation1], 32
      %413 = vst [vmem:[%s412] ss:$2 sm:$0xff] %v173
      %s414 = scalar_lea.vmem [#allocation1], 48
      %415 = vst [vmem:[%s414] ss:$2 sm:$0xff] %v174
      %v416 = vld.sshfl [vmem:[#allocation1] sm:$0xff pattern:$0x75316420]
      %v417 = vld.sshfl [vmem:[#allocation1 + $0x8] sm:$0xff pattern:$0x75316420]
      %v418 = vld.sshfl [vmem:[#allocation1 + $0x10] sm:$0xff pattern:$0x75316420]
      %v419 = vld.sshfl [vmem:[#allocation1 + $0x18] sm:$0xff pattern:$0x75316420]
      %v420 = vld.sshfl [vmem:[#allocation1 + $0x20] sm:$0xff pattern:$0x75316420]
      %v421 = vld.sshfl [vmem:[#allocation1 + $0x28] sm:$0xff pattern:$0x75316420]
      %v422 = vld.sshfl [vmem:[#allocation1 + $0x30] sm:$0xff pattern:$0x75316420]
      %v423 = vld.sshfl [vmem:[#allocation1 + $0x38] sm:$0xff pattern:$0x75316420]
      %v425 = vsel %vm228, %v175, 0
      %v427 = vsel %vm232, %v416, 0
      %v429 = vsel %vm232, %v417, 0
      %v431 = vsel %vm232, %v418, 0
      %v433 = vsel %vm232, %v419, 0
      %v435 = vsel %vm232, %v420, 0
      %v437 = vsel %vm232, %v421, 0
      %v439 = vsel %vm232, %v422, 0
      %v441 = vsel %vm232, %v423, 0
      %443 = vmatpush.msra.mxu0 0.0
      %444 = vmatpush.msra.mxu0 0.0
      %445 = vmatpush.msra.mxu0 0.0
      %446 = vmatpush.msra.mxu0 0.0
      %447 = vmatpush.msra.mxu0 0.0
      %448 = vmatpush.msra.mxu0 0.0
      %449 = vmatpush.msra.mxu0 0.0
      %450 = vmatpush.msra.mxu0 0.0
      %451 = vmatpush.msra.mxu0 0.0
      %452 = vmatpush.msra.mxu0 0.0
      %453 = vmatpush.msra.mxu0 0.0
      %454 = vmatpush.msra.mxu0 0.0
      %455 = vmatpush.msra.mxu0 0.0
      %456 = vmatpush.msra.mxu0 0.0
      %457 = vmatpush.msra.mxu0 0.0
      %458 = vmatpush.msra.mxu0 %v427
      %459 = vmatmul.f32.gmra.mxu0 %v425
      %v460 = vpop.f32.mrf.mxu0
      %v461 = vadd.f32 %v267, %v460
      %462 = vdwg.mxu0
      %463 = vmatpush.msra.mxu0 0.0
      %464 = vmatpush.msra.mxu0 0.0
      %465 = vmatpush.msra.mxu0 0.0
      %466 = vmatpush.msra.mxu0 0.0
      %467 = vmatpush.msra.mxu0 0.0
      %468 = vmatpush.msra.mxu0 0.0
      %469 = vmatpush.msra.mxu0 0.0
      %470 = vmatpush.msra.mxu0 0.0
      %471 = vmatpush.msra.mxu0 0.0
      %472 = vmatpush.msra.mxu0 0.0
      %473 = vmatpush.msra.mxu0 0.0
      %474 = vmatpush.msra.mxu0 0.0
      %475 = vmatpush.msra.mxu0 0.0
      %476 = vmatpush.msra.mxu0 0.0
      %477 = vmatpush.msra.mxu0 0.0
      %478 = vmatpush.msra.mxu0 %v429
      %479 = vmatmul.f32.gmra.mxu0 %v425
      %v480 = vpop.f32.mrf.mxu0
      %v481 = vadd.f32 %v287, %v480
      %482 = vdwg.mxu0
      %483 = vmatpush.msra.mxu0 0.0
      %484 = vmatpush.msra.mxu0 0.0
      %485 = vmatpush.msra.mxu0 0.0
      %486 = vmatpush.msra.mxu0 0.0
      %487 = vmatpush.msra.mxu0 0.0
      %488 = vmatpush.msra.mxu0 0.0
      %489 = vmatpush.msra.mxu0 0.0
      %490 = vmatpush.msra.mxu0 0.0
      %491 = vmatpush.msra.mxu0 0.0
      %492 = vmatpush.msra.mxu0 0.0
      %493 = vmatpush.msra.mxu0 0.0
      %494 = vmatpush.msra.mxu0 0.0
      %495 = vmatpush.msra.mxu0 0.0
      %496 = vmatpush.msra.mxu0 0.0
      %497 = vmatpush.msra.mxu0 0.0
      %498 = vmatpush.msra.mxu0 %v431
      %499 = vmatmul.f32.gmra.mxu0 %v425
      %v500 = vpop.f32.mrf.mxu0
      %v501 = vadd.f32 %v307, %v500
      %502 = vdwg.mxu0
      %503 = vmatpush.msra.mxu0 0.0
      %504 = vmatpush.msra.mxu0 0.0
      %505 = vmatpush.msra.mxu0 0.0
      %506 = vmatpush.msra.mxu0 0.0
      %507 = vmatpush.msra.mxu0 0.0
      %508 = vmatpush.msra.mxu0 0.0
      %509 = vmatpush.msra.mxu0 0.0
      %510 = vmatpush.msra.mxu0 0.0
      %511 = vmatpush.msra.mxu0 0.0
      %512 = vmatpush.msra.mxu0 0.0
      %513 = vmatpush.msra.mxu0 0.0
      %514 = vmatpush.msra.mxu0 0.0
      %515 = vmatpush.msra.mxu0 0.0
      %516 = vmatpush.msra.mxu0 0.0
      %517 = vmatpush.msra.mxu0 0.0
      %518 = vmatpush.msra.mxu0 %v433
      %519 = vmatmul.f32.gmra.mxu0 %v425
      %v520 = vpop.f32.mrf.mxu0
      %v521 = vadd.f32 %v327, %v520
      %522 = vdwg.mxu0
      %523 = vmatpush.msra.mxu0 0.0
      %524 = vmatpush.msra.mxu0 0.0
      %525 = vmatpush.msra.mxu0 0.0
      %526 = vmatpush.msra.mxu0 0.0
      %527 = vmatpush.msra.mxu0 0.0
      %528 = vmatpush.msra.mxu0 0.0
      %529 = vmatpush.msra.mxu0 0.0
      %530 = vmatpush.msra.mxu0 0.0
      %531 = vmatpush.msra.mxu0 0.0
      %532 = vmatpush.msra.mxu0 0.0
      %533 = vmatpush.msra.mxu0 0.0
      %534 = vmatpush.msra.mxu0 0.0
      %535 = vmatpush.msra.mxu0 0.0
      %536 = vmatpush.msra.mxu0 0.0
      %537 = vmatpush.msra.mxu0 0.0
      %538 = vmatpush.msra.mxu0 %v435
      %539 = vmatmul.f32.gmra.mxu0 %v425
      %v540 = vpop.f32.mrf.mxu0
      %v541 = vadd.f32 %v347, %v540
      %542 = vdwg.mxu0
      %543 = vmatpush.msra.mxu0 0.0
      %544 = vmatpush.msra.mxu0 0.0
      %545 = vmatpush.msra.mxu0 0.0
      %546 = vmatpush.msra.mxu0 0.0
      %547 = vmatpush.msra.mxu0 0.0
      %548 = vmatpush.msra.mxu0 0.0
      %549 = vmatpush.msra.mxu0 0.0
      %550 = vmatpush.msra.mxu0 0.0
      %551 = vmatpush.msra.mxu0 0.0
      %552 = vmatpush.msra.mxu0 0.0
      %553 = vmatpush.msra.mxu0 0.0
      %554 = vmatpush.msra.mxu0 0.0
      %555 = vmatpush.msra.mxu0 0.0
      %556 = vmatpush.msra.mxu0 0.0
      %557 = vmatpush.msra.mxu0 0.0
      %558 = vmatpush.msra.mxu0 %v437
      %559 = vmatmul.f32.gmra.mxu0 %v425
      %v560 = vpop.f32.mrf.mxu0
      %v561 = vadd.f32 %v367, %v560
      %562 = vdwg.mxu0
      %563 = vmatpush.msra.mxu0 0.0
      %564 = vmatpush.msra.mxu0 0.0
      %565 = vmatpush.msra.mxu0 0.0
      %566 = vmatpush.msra.mxu0 0.0
      %567 = vmatpush.msra.mxu0 0.0
      %568 = vmatpush.msra.mxu0 0.0
      %569 = vmatpush.msra.mxu0 0.0
      %570 = vmatpush.msra.mxu0 0.0
      %571 = vmatpush.msra.mxu0 0.0
      %572 = vmatpush.msra.mxu0 0.0
      %573 = vmatpush.msra.mxu0 0.0
      %574 = vmatpush.msra.mxu0 0.0
      %575 = vmatpush.msra.mxu0 0.0
      %576 = vmatpush.msra.mxu0 0.0
      %577 = vmatpush.msra.mxu0 0.0
      %578 = vmatpush.msra.mxu0 %v439
      %579 = vmatmul.f32.gmra.mxu0 %v425
      %v580 = vpop.f32.mrf.mxu0
      %v581 = vadd.f32 %v387, %v580
      %582 = vdwg.mxu0
      %583 = vmatpush.msra.mxu0 0.0
      %584 = vmatpush.msra.mxu0 0.0
      %585 = vmatpush.msra.mxu0 0.0
      %586 = vmatpush.msra.mxu0 0.0
      %587 = vmatpush.msra.mxu0 0.0
      %588 = vmatpush.msra.mxu0 0.0
      %589 = vmatpush.msra.mxu0 0.0
      %590 = vmatpush.msra.mxu0 0.0
      %591 = vmatpush.msra.mxu0 0.0
      %592 = vmatpush.msra.mxu0 0.0
      %593 = vmatpush.msra.mxu0 0.0
      %594 = vmatpush.msra.mxu0 0.0
      %595 = vmatpush.msra.mxu0 0.0
      %596 = vmatpush.msra.mxu0 0.0
      %597 = vmatpush.msra.mxu0 0.0
      %598 = vmatpush.msra.mxu0 %v441
      %599 = vmatmul.f32.gmra.mxu0 %v425
      %v600 = vpop.f32.mrf.mxu0
      %v601 = vadd.f32 %v407, %v600
      %602 = vdwg.mxu0
      %v603 = vld [vmem:[%s165] sm:$0x77]
      %v604 = vld [vmem:[%s165 + $0x8] sm:$0x77]
      %v605 = vld [vmem:[%s165 + $0x10] sm:$0x77]
      %v606 = vld [vmem:[%s165 + $0x18] sm:$0x77]
      %v607 = vld [vmem:[%s165 + $0x20] sm:$0x7]
      %s608 = scalar_lea.vmem %s1, 16
      %v609 = vld [vmem:[%s608] sm:$0xff]
      %615 = vst [vmem:[#allocation1] ss:$2 sm:$0xff] %v603
      %s616 = scalar_lea.vmem [#allocation1], 16
      %617 = vst [vmem:[%s616] ss:$2 sm:$0xff] %v604
      %s618 = scalar_lea.vmem [#allocation1], 32
      %619 = vst [vmem:[%s618] ss:$2 sm:$0xff] %v605
      %s620 = scalar_lea.vmem [#allocation1], 48
      %621 = vst [vmem:[%s620] ss:$2 sm:$0xff] %v606
      %v622 = vld.sshfl [vmem:[#allocation1] sm:$0xff pattern:$0x75316420]
      %v623 = vld.sshfl [vmem:[#allocation1 + $0x8] sm:$0xff pattern:$0x75316420]
      %v624 = vld.sshfl [vmem:[#allocation1 + $0x10] sm:$0xff pattern:$0x75316420]
      %v625 = vld.sshfl [vmem:[#allocation1 + $0x18] sm:$0xff pattern:$0x75316420]
      %v626 = vld.sshfl [vmem:[#allocation1 + $0x20] sm:$0xff pattern:$0x75316420]
      %v627 = vld.sshfl [vmem:[#allocation1 + $0x28] sm:$0xff pattern:$0x75316420]
      %v628 = vld.sshfl [vmem:[#allocation1 + $0x30] sm:$0xff pattern:$0x75316420]
      %v629 = vld.sshfl [vmem:[#allocation1 + $0x38] sm:$0xff pattern:$0x75316420]
      %630 = vst [vmem:[#allocation1] ss:$2 sm:$0xff] %v607
      %v631 = vld.sshfl [vmem:[#allocation1] sm:$0xff pattern:$0x75316420]
      %632 = vrot.lane.b32.xlu0 %v622, 126
      %v633 = vpop.permute.xlu0 %632
      %634 = vrot.lane.b32.xlu0 %v623, 126
      %v635 = vpop.permute.xlu0 %634
      %636 = vrot.lane.b32.xlu0 %v624, 126
      %v637 = vpop.permute.xlu0 %636
      %638 = vrot.lane.b32.xlu0 %v625, 126
      %v639 = vpop.permute.xlu0 %638
      %640 = vrot.lane.b32.xlu0 %v626, 126
      %v641 = vpop.permute.xlu0 %640
      %642 = vrot.lane.b32.xlu0 %v627, 126
      %v643 = vpop.permute.xlu0 %642
      %644 = vrot.lane.b32.xlu0 %v628, 126
      %v645 = vpop.permute.xlu0 %644
      %646 = vrot.lane.b32.xlu0 %v629, 126
      %v647 = vpop.permute.xlu0 %646
      %648 = vrot.lane.b32.xlu0 %v631, 126
      %v649 = vpop.permute.xlu0 %648
      %vm650 = vcmask 1031168
      %v651 = vsel %vm650, %v633, %v635
      %v652 = vsel %vm650, %v635, %v637
      %v653 = vsel %vm650, %v637, %v639
      %v654 = vsel %vm650, %v639, %v641
      %v655 = vsel %vm650, %v641, %v643
      %v656 = vsel %vm650, %v643, %v645
      %v657 = vsel %vm650, %v645, %v647
      %v658 = vsel %vm650, %v647, %v649
      %v660 = vsel %vm228, %v609, 0
      %v662 = vsel %vm232, %v651, 0
      %v664 = vsel %vm232, %v652, 0
      %v666 = vsel %vm232, %v653, 0
      %v668 = vsel %vm232, %v654, 0
      %v670 = vsel %vm232, %v655, 0
      %v672 = vsel %vm232, %v656, 0
      %v674 = vsel %vm232, %v657, 0
      %v676 = vsel %vm232, %v658, 0
      %678 = vmatpush.msra.mxu0 0.0
      %679 = vmatpush.msra.mxu0 0.0
      %680 = vmatpush.msra.mxu0 0.0
      %681 = vmatpush.msra.mxu0 0.0
      %682 = vmatpush.msra.mxu0 0.0
      %683 = vmatpush.msra.mxu0 0.0
      %684 = vmatpush.msra.mxu0 0.0
      %685 = vmatpush.msra.mxu0 0.0
      %686 = vmatpush.msra.mxu0 0.0
      %687 = vmatpush.msra.mxu0 0.0
      %688 = vmatpush.msra.mxu0 0.0
      %689 = vmatpush.msra.mxu0 0.0
      %690 = vmatpush.msra.mxu0 0.0
      %691 = vmatpush.msra.mxu0 0.0
      %692 = vmatpush.msra.mxu0 0.0
      %693 = vmatpush.msra.mxu0 %v662
      %694 = vmatmul.f32.gmra.mxu0 %v660
      %v695 = vpop.f32.mrf.mxu0
      %v696 = vadd.f32 0.0, %v695
      %697 = vdwg.mxu0
      %698 = vmatpush.msra.mxu0 0.0
      %699 = vmatpush.msra.mxu0 0.0
      %700 = vmatpush.msra.mxu0 0.0
      %701 = vmatpush.msra.mxu0 0.0
      %702 = vmatpush.msra.mxu0 0.0
      %703 = vmatpush.msra.mxu0 0.0
      %704 = vmatpush.msra.mxu0 0.0
      %705 = vmatpush.msra.mxu0 0.0
      %706 = vmatpush.msra.mxu0 0.0
      %707 = vmatpush.msra.mxu0 0.0
      %708 = vmatpush.msra.mxu0 0.0
      %709 = vmatpush.msra.mxu0 0.0
      %710 = vmatpush.msra.mxu0 0.0
      %711 = vmatpush.msra.mxu0 0.0
      %712 = vmatpush.msra.mxu0 0.0
      %713 = vmatpush.msra.mxu0 %v664
      %714 = vmatmul.f32.gmra.mxu0 %v660
      %v715 = vpop.f32.mrf.mxu0
      %v716 = vadd.f32 0.0, %v715
      %717 = vdwg.mxu0
      %718 = vmatpush.msra.mxu0 0.0
      %719 = vmatpush.msra.mxu0 0.0
      %720 = vmatpush.msra.mxu0 0.0
      %721 = vmatpush.msra.mxu0 0.0
      %722 = vmatpush.msra.mxu0 0.0
      %723 = vmatpush.msra.mxu0 0.0
      %724 = vmatpush.msra.mxu0 0.0
      %725 = vmatpush.msra.mxu0 0.0
      %726 = vmatpush.msra.mxu0 0.0
      %727 = vmatpush.msra.mxu0 0.0
      %728 = vmatpush.msra.mxu0 0.0
      %729 = vmatpush.msra.mxu0 0.0
      %730 = vmatpush.msra.mxu0 0.0
      %731 = vmatpush.msra.mxu0 0.0
      %732 = vmatpush.msra.mxu0 0.0
      %733 = vmatpush.msra.mxu0 %v666
      %734 = vmatmul.f32.gmra.mxu0 %v660
      %v735 = vpop.f32.mrf.mxu0
      %v736 = vadd.f32 0.0, %v735
      %737 = vdwg.mxu0
      %738 = vmatpush.msra.mxu0 0.0
      %739 = vmatpush.msra.mxu0 0.0
      %740 = vmatpush.msra.mxu0 0.0
      %741 = vmatpush.msra.mxu0 0.0
      %742 = vmatpush.msra.mxu0 0.0
      %743 = vmatpush.msra.mxu0 0.0
      %744 = vmatpush.msra.mxu0 0.0
      %745 = vmatpush.msra.mxu0 0.0
      %746 = vmatpush.msra.mxu0 0.0
      %747 = vmatpush.msra.mxu0 0.0
      %748 = vmatpush.msra.mxu0 0.0
      %749 = vmatpush.msra.mxu0 0.0
      %750 = vmatpush.msra.mxu0 0.0
      %751 = vmatpush.msra.mxu0 0.0
      %752 = vmatpush.msra.mxu0 0.0
      %753 = vmatpush.msra.mxu0 %v668
      %754 = vmatmul.f32.gmra.mxu0 %v660
      %v755 = vpop.f32.mrf.mxu0
      %v756 = vadd.f32 0.0, %v755
      %757 = vdwg.mxu0
      %758 = vmatpush.msra.mxu0 0.0
      %759 = vmatpush.msra.mxu0 0.0
      %760 = vmatpush.msra.mxu0 0.0
      %761 = vmatpush.msra.mxu0 0.0
      %762 = vmatpush.msra.mxu0 0.0
      %763 = vmatpush.msra.mxu0 0.0
      %764 = vmatpush.msra.mxu0 0.0
      %765 = vmatpush.msra.mxu0 0.0
      %766 = vmatpush.msra.mxu0 0.0
      %767 = vmatpush.msra.mxu0 0.0
      %768 = vmatpush.msra.mxu0 0.0
      %769 = vmatpush.msra.mxu0 0.0
      %770 = vmatpush.msra.mxu0 0.0
      %771 = vmatpush.msra.mxu0 0.0
      %772 = vmatpush.msra.mxu0 0.0
      %773 = vmatpush.msra.mxu0 %v670
      %774 = vmatmul.f32.gmra.mxu0 %v660
      %v775 = vpop.f32.mrf.mxu0
      %v776 = vadd.f32 0.0, %v775
      %777 = vdwg.mxu0
      %778 = vmatpush.msra.mxu0 0.0
      %779 = vmatpush.msra.mxu0 0.0
      %780 = vmatpush.msra.mxu0 0.0
      %781 = vmatpush.msra.mxu0 0.0
      %782 = vmatpush.msra.mxu0 0.0
      %783 = vmatpush.msra.mxu0 0.0
      %784 = vmatpush.msra.mxu0 0.0
      %785 = vmatpush.msra.mxu0 0.0
      %786 = vmatpush.msra.mxu0 0.0
      %787 = vmatpush.msra.mxu0 0.0
      %788 = vmatpush.msra.mxu0 0.0
      %789 = vmatpush.msra.mxu0 0.0
      %790 = vmatpush.msra.mxu0 0.0
      %791 = vmatpush.msra.mxu0 0.0
      %792 = vmatpush.msra.mxu0 0.0
      %793 = vmatpush.msra.mxu0 %v672
      %794 = vmatmul.f32.gmra.mxu0 %v660
      %v795 = vpop.f32.mrf.mxu0
      %v796 = vadd.f32 0.0, %v795
      %797 = vdwg.mxu0
      %798 = vmatpush.msra.mxu0 0.0
      %799 = vmatpush.msra.mxu0 0.0
      %800 = vmatpush.msra.mxu0 0.0
      %801 = vmatpush.msra.mxu0 0.0
      %802 = vmatpush.msra.mxu0 0.0
      %803 = vmatpush.msra.mxu0 0.0
      %804 = vmatpush.msra.mxu0 0.0
      %805 = vmatpush.msra.mxu0 0.0
      %806 = vmatpush.msra.mxu0 0.0
      %807 = vmatpush.msra.mxu0 0.0
      %808 = vmatpush.msra.mxu0 0.0
      %809 = vmatpush.msra.mxu0 0.0
      %810 = vmatpush.msra.mxu0 0.0
      %811 = vmatpush.msra.mxu0 0.0
      %812 = vmatpush.msra.mxu0 0.0
      %813 = vmatpush.msra.mxu0 %v674
      %814 = vmatmul.f32.gmra.mxu0 %v660
      %v815 = vpop.f32.mrf.mxu0
      %v816 = vadd.f32 0.0, %v815
      %817 = vdwg.mxu0
      %818 = vmatpush.msra.mxu0 0.0
      %819 = vmatpush.msra.mxu0 0.0
      %820 = vmatpush.msra.mxu0 0.0
      %821 = vmatpush.msra.mxu0 0.0
      %822 = vmatpush.msra.mxu0 0.0
      %823 = vmatpush.msra.mxu0 0.0
      %824 = vmatpush.msra.mxu0 0.0
      %825 = vmatpush.msra.mxu0 0.0
      %826 = vmatpush.msra.mxu0 0.0
      %827 = vmatpush.msra.mxu0 0.0
      %828 = vmatpush.msra.mxu0 0.0
      %829 = vmatpush.msra.mxu0 0.0
      %830 = vmatpush.msra.mxu0 0.0
      %831 = vmatpush.msra.mxu0 0.0
      %832 = vmatpush.msra.mxu0 0.0
      %833 = vmatpush.msra.mxu0 %v676
      %834 = vmatmul.f32.gmra.mxu0 %v660
      %v835 = vpop.f32.mrf.mxu0
      %v836 = vadd.f32 0.0, %v835
      %837 = vdwg.mxu0
      %v838 = vadd.f32 %v461, %v696
      %v839 = vadd.f32 %v481, %v716
      %v840 = vadd.f32 %v501, %v736
      %v841 = vadd.f32 %v521, %v756
      %v842 = vadd.f32 %v541, %v776
      %v843 = vadd.f32 %v561, %v796
      %v844 = vadd.f32 %v581, %v816
      %v845 = vadd.f32 %v601, %v836
      %v846 = vld [vmem:[%s165] sm:$0x77]
      %v847 = vld [vmem:[%s165 + $0x8] sm:$0x77]
      %v848 = vld [vmem:[%s165 + $0x10] sm:$0x77]
      %v849 = vld [vmem:[%s165 + $0x18] sm:$0x77]
      %v850 = vld [vmem:[%s165 + $0x20] sm:$0x7]
      %s851 = scalar_lea.vmem %s1, 24
      %v852 = vld [vmem:[%s851] sm:$0xff]
      %858 = vst [vmem:[#allocation1] ss:$2 sm:$0xff] %v846
      %s859 = scalar_lea.vmem [#allocation1], 16
      %860 = vst [vmem:[%s859] ss:$2 sm:$0xff] %v847
      %s861 = scalar_lea.vmem [#allocation1], 32
      %862 = vst [vmem:[%s861] ss:$2 sm:$0xff] %v848
      %s863 = scalar_lea.vmem [#allocation1], 48
      %864 = vst [vmem:[%s863] ss:$2 sm:$0xff] %v849
      %v865 = vld.sshfl [vmem:[#allocation1] sm:$0xff pattern:$0x75316420]
      %v866 = vld.sshfl [vmem:[#allocation1 + $0x8] sm:$0xff pattern:$0x75316420]
      %v867 = vld.sshfl [vmem:[#allocation1 + $0x10] sm:$0xff pattern:$0x75316420]
      %v868 = vld.sshfl [vmem:[#allocation1 + $0x18] sm:$0xff pattern:$0x75316420]
      %v869 = vld.sshfl [vmem:[#allocation1 + $0x20] sm:$0xff pattern:$0x75316420]
      %v870 = vld.sshfl [vmem:[#allocation1 + $0x28] sm:$0xff pattern:$0x75316420]
      %v871 = vld.sshfl [vmem:[#allocation1 + $0x30] sm:$0xff pattern:$0x75316420]
      %v872 = vld.sshfl [vmem:[#allocation1 + $0x38] sm:$0xff pattern:$0x75316420]
      %873 = vst [vmem:[#allocation1] ss:$2 sm:$0xff] %v850
      %v874 = vld.sshfl [vmem:[#allocation1] sm:$0xff pattern:$0x75316420]
      %875 = vrot.lane.b32.xlu0 %v865, 96
      %v876 = vpop.permute.xlu0 %875
      %877 = vrot.lane.b32.xlu0 %v866, 96
      %v878 = vpop.permute.xlu0 %877
      %879 = vrot.lane.b32.xlu0 %v867, 96
      %v880 = vpop.permute.xlu0 %879
      %881 = vrot.lane.b32.xlu0 %v868, 96
      %v882 = vpop.permute.xlu0 %881
      %883 = vrot.lane.b32.xlu0 %v869, 96
      %v884 = vpop.permute.xlu0 %883
      %885 = vrot.lane.b32.xlu0 %v870, 96
      %v886 = vpop.permute.xlu0 %885
      %887 = vrot.lane.b32.xlu0 %v871, 96
      %v888 = vpop.permute.xlu0 %887
      %889 = vrot.lane.b32.xlu0 %v872, 96
      %v890 = vpop.permute.xlu0 %889
      %891 = vrot.lane.b32.xlu0 %v874, 96
      %v892 = vpop.permute.xlu0 %891
      %vm893 = vcmask 785408
      %v894 = vsel %vm893, %v876, %v878
      %v895 = vsel %vm893, %v878, %v880
      %v896 = vsel %vm893, %v880, %v882
      %v897 = vsel %vm893, %v882, %v884
      %v898 = vsel %vm893, %v884, %v886
      %v899 = vsel %vm893, %v886, %v888
      %v900 = vsel %vm893, %v888, %v890
      %v901 = vsel %vm893, %v890, %v892
      %v903 = vsel %vm228, %v852, 0
      %v905 = vsel %vm232, %v894, 0
      %v907 = vsel %vm232, %v895, 0
      %v909 = vsel %vm232, %v896, 0
      %v911 = vsel %vm232, %v897, 0
      %v913 = vsel %vm232, %v898, 0
      %v915 = vsel %vm232, %v899, 0
      %v917 = vsel %vm232, %v900, 0
      %v919 = vsel %vm232, %v901, 0
      %921 = vmatpush.msra.mxu0 0.0
      %922 = vmatpush.msra.mxu0 0.0
      %923 = vmatpush.msra.mxu0 0.0
      %924 = vmatpush.msra.mxu0 0.0
      %925 = vmatpush.msra.mxu0 0.0
      %926 = vmatpush.msra.mxu0 0.0
      %927 = vmatpush.msra.mxu0 0.0
      %928 = vmatpush.msra.mxu0 0.0
      %929 = vmatpush.msra.mxu0 0.0
      %930 = vmatpush.msra.mxu0 0.0
      %931 = vmatpush.msra.mxu0 0.0
      %932 = vmatpush.msra.mxu0 0.0
      %933 = vmatpush.msra.mxu0 0.0
      %934 = vmatpush.msra.mxu0 0.0
      %935 = vmatpush.msra.mxu0 0.0
      %936 = vmatpush.msra.mxu0 %v905
      %937 = vmatmul.f32.gmra.mxu0 %v903
      %v938 = vpop.f32.mrf.mxu0
      %v939 = vadd.f32 0.0, %v938
      %940 = vdwg.mxu0
      %941 = vmatpush.msra.mxu0 0.0
      %942 = vmatpush.msra.mxu0 0.0
      %943 = vmatpush.msra.mxu0 0.0
      %944 = vmatpush.msra.mxu0 0.0
      %945 = vmatpush.msra.mxu0 0.0
      %946 = vmatpush.msra.mxu0 0.0
      %947 = vmatpush.msra.mxu0 0.0
      %948 = vmatpush.msra.mxu0 0.0
      %949 = vmatpush.msra.mxu0 0.0
      %950 = vmatpush.msra.mxu0 0.0
      %951 = vmatpush.msra.mxu0 0.0
      %952 = vmatpush.msra.mxu0 0.0
      %953 = vmatpush.msra.mxu0 0.0
      %954 = vmatpush.msra.mxu0 0.0
      %955 = vmatpush.msra.mxu0 0.0
      %956 = vmatpush.msra.mxu0 %v907
      %957 = vmatmul.f32.gmra.mxu0 %v903
      %v958 = vpop.f32.mrf.mxu0
      %v959 = vadd.f32 0.0, %v958
      %960 = vdwg.mxu0
      %961 = vmatpush.msra.mxu0 0.0
      %962 = vmatpush.msra.mxu0 0.0
      %963 = vmatpush.msra.mxu0 0.0
      %964 = vmatpush.msra.mxu0 0.0
      %965 = vmatpush.msra.mxu0 0.0
      %966 = vmatpush.msra.mxu0 0.0
      %967 = vmatpush.msra.mxu0 0.0
      %968 = vmatpush.msra.mxu0 0.0
      %969 = vmatpush.msra.mxu0 0.0
      %970 = vmatpush.msra.mxu0 0.0
      %971 = vmatpush.msra.mxu0 0.0
      %972 = vmatpush.msra.mxu0 0.0
      %973 = vmatpush.msra.mxu0 0.0
      %974 = vmatpush.msra.mxu0 0.0
      %975 = vmatpush.msra.mxu0 0.0
      %976 = vmatpush.msra.mxu0 %v909
      %977 = vmatmul.f32.gmra.mxu0 %v903
      %v978 = vpop.f32.mrf.mxu0
      %v979 = vadd.f32 0.0, %v978
      %980 = vdwg.mxu0
      %981 = vmatpush.msra.mxu0 0.0
      %982 = vmatpush.msra.mxu0 0.0
      %983 = vmatpush.msra.mxu0 0.0
      %984 = vmatpush.msra.mxu0 0.0
      %985 = vmatpush.msra.mxu0 0.0
      %986 = vmatpush.msra.mxu0 0.0
      %987 = vmatpush.msra.mxu0 0.0
      %988 = vmatpush.msra.mxu0 0.0
      %989 = vmatpush.msra.mxu0 0.0
      %990 = vmatpush.msra.mxu0 0.0
      %991 = vmatpush.msra.mxu0 0.0
      %992 = vmatpush.msra.mxu0 0.0
      %993 = vmatpush.msra.mxu0 0.0
      %994 = vmatpush.msra.mxu0 0.0
      %995 = vmatpush.msra.mxu0 0.0
      %996 = vmatpush.msra.mxu0 %v911
      %997 = vmatmul.f32.gmra.mxu0 %v903
      %v998 = vpop.f32.mrf.mxu0
      %v999 = vadd.f32 0.0, %v998
      %1000 = vdwg.mxu0
      %1001 = vmatpush.msra.mxu0 0.0
      %1002 = vmatpush.msra.mxu0 0.0
      %1003 = vmatpush.msra.mxu0 0.0
      %1004 = vmatpush.msra.mxu0 0.0
      %1005 = vmatpush.msra.mxu0 0.0
      %1006 = vmatpush.msra.mxu0 0.0
      %1007 = vmatpush.msra.mxu0 0.0
      %1008 = vmatpush.msra.mxu0 0.0
      %1009 = vmatpush.msra.mxu0 0.0
      %1010 = vmatpush.msra.mxu0 0.0
      %1011 = vmatpush.msra.mxu0 0.0
      %1012 = vmatpush.msra.mxu0 0.0
      %1013 = vmatpush.msra.mxu0 0.0
      %1014 = vmatpush.msra.mxu0 0.0
      %1015 = vmatpush.msra.mxu0 0.0
      %1016 = vmatpush.msra.mxu0 %v913
      %1017 = vmatmul.f32.gmra.mxu0 %v903
      %v1018 = vpop.f32.mrf.mxu0
      %v1019 = vadd.f32 0.0, %v1018
      %1020 = vdwg.mxu0
      %1021 = vmatpush.msra.mxu0 0.0
      %1022 = vmatpush.msra.mxu0 0.0
      %1023 = vmatpush.msra.mxu0 0.0
      %1024 = vmatpush.msra.mxu0 0.0
      %1025 = vmatpush.msra.mxu0 0.0
      %1026 = vmatpush.msra.mxu0 0.0
      %1027 = vmatpush.msra.mxu0 0.0
      %1028 = vmatpush.msra.mxu0 0.0
      %1029 = vmatpush.msra.mxu0 0.0
      %1030 = vmatpush.msra.mxu0 0.0
      %1031 = vmatpush.msra.mxu0 0.0
      %1032 = vmatpush.msra.mxu0 0.0
      %1033 = vmatpush.msra.mxu0 0.0
      %1034 = vmatpush.msra.mxu0 0.0
      %1035 = vmatpush.msra.mxu0 0.0
      %1036 = vmatpush.msra.mxu0 %v915
      %1037 = vmatmul.f32.gmra.mxu0 %v903
      %v1038 = vpop.f32.mrf.mxu0
      %v1039 = vadd.f32 0.0, %v1038
      %1040 = vdwg.mxu0
      %1041 = vmatpush.msra.mxu0 0.0
      %1042 = vmatpush.msra.mxu0 0.0
      %1043 = vmatpush.msra.mxu0 0.0
      %1044 = vmatpush.msra.mxu0 0.0
      %1045 = vmatpush.msra.mxu0 0.0
      %1046 = vmatpush.msra.mxu0 0.0
      %1047 = vmatpush.msra.mxu0 0.0
      %1048 = vmatpush.msra.mxu0 0.0
      %1049 = vmatpush.msra.mxu0 0.0
      %1050 = vmatpush.msra.mxu0 0.0
      %1051 = vmatpush.msra.mxu0 0.0
      %1052 = vmatpush.msra.mxu0 0.0
      %1053 = vmatpush.msra.mxu0 0.0
      %1054 = vmatpush.msra.mxu0 0.0
      %1055 = vmatpush.msra.mxu0 0.0
      %1056 = vmatpush.msra.mxu0 %v917
      %1057 = vmatmul.f32.gmra.mxu0 %v903
      %v1058 = vpop.f32.mrf.mxu0
      %v1059 = vadd.f32 0.0, %v1058
      %1060 = vdwg.mxu0
      %1061 = vmatpush.msra.mxu0 0.0
      %1062 = vmatpush.msra.mxu0 0.0
      %1063 = vmatpush.msra.mxu0 0.0
      %1064 = vmatpush.msra.mxu0 0.0
      %1065 = vmatpush.msra.mxu0 0.0
      %1066 = vmatpush.msra.mxu0 0.0
      %1067 = vmatpush.msra.mxu0 0.0
      %1068 = vmatpush.msra.mxu0 0.0
      %1069 = vmatpush.msra.mxu0 0.0
      %1070 = vmatpush.msra.mxu0 0.0
      %1071 = vmatpush.msra.mxu0 0.0
      %1072 = vmatpush.msra.mxu0 0.0
      %1073 = vmatpush.msra.mxu0 0.0
      %1074 = vmatpush.msra.mxu0 0.0
      %1075 = vmatpush.msra.mxu0 0.0
      %1076 = vmatpush.msra.mxu0 %v919
      %1077 = vmatmul.f32.gmra.mxu0 %v903
      %v1078 = vpop.f32.mrf.mxu0
      %v1079 = vadd.f32 0.0, %v1078
      %1080 = vdwg.mxu0
      %v1081 = vadd.f32 %v838, %v939
      %v1082 = vadd.f32 %v839, %v959
      %v1083 = vadd.f32 %v840, %v979
      %v1084 = vadd.f32 %v841, %v999
      %v1085 = vadd.f32 %v842, %v1019
      %v1086 = vadd.f32 %v843, %v1039
      %v1087 = vadd.f32 %v844, %v1059
      %v1088 = vadd.f32 %v845, %v1079
      %v1089 = vld [vmem:[%s165] sm:$0x77]
      %v1090 = vld [vmem:[%s165 + $0x8] sm:$0x77]
      %v1091 = vld [vmem:[%s165 + $0x10] sm:$0x77]
      %v1092 = vld [vmem:[%s165 + $0x18] sm:$0x77]
      %v1093 = vld [vmem:[%s165 + $0x20] sm:$0x7]
      %s1094 = scalar_lea.vmem %s1, 32
      %v1095 = vld [vmem:[%s1094] sm:$0xff]
      %1101 = vst [vmem:[#allocation1] ss:$2 sm:$0xff] %v1089
      %s1102 = scalar_lea.vmem [#allocation1], 16
      %1103 = vst [vmem:[%s1102] ss:$2 sm:$0xff] %v1090
      %s1104 = scalar_lea.vmem [#allocation1], 32
      %1105 = vst [vmem:[%s1104] ss:$2 sm:$0xff] %v1091
      %s1106 = scalar_lea.vmem [#allocation1], 48
      %1107 = vst [vmem:[%s1106] ss:$2 sm:$0xff] %v1092
      %v1108 = vld.sshfl [vmem:[#allocation1] sm:$0xff pattern:$0x75316420]
      %v1109 = vld.sshfl [vmem:[#allocation1 + $0x8] sm:$0xff pattern:$0x75316420]
      %v1110 = vld.sshfl [vmem:[#allocation1 + $0x10] sm:$0xff pattern:$0x75316420]
      %v1111 = vld.sshfl [vmem:[#allocation1 + $0x18] sm:$0xff pattern:$0x75316420]
      %v1112 = vld.sshfl [vmem:[#allocation1 + $0x20] sm:$0xff pattern:$0x75316420]
      %v1113 = vld.sshfl [vmem:[#allocation1 + $0x28] sm:$0xff pattern:$0x75316420]
      %v1114 = vld.sshfl [vmem:[#allocation1 + $0x30] sm:$0xff pattern:$0x75316420]
      %v1115 = vld.sshfl [vmem:[#allocation1 + $0x38] sm:$0xff pattern:$0x75316420]
      %1116 = vst [vmem:[#allocation1] ss:$2 sm:$0xff] %v1093
      %v1117 = vld.sshfl [vmem:[#allocation1] sm:$0xff pattern:$0x75316420]
      %1118 = vrot.lane.b32.xlu0 %v1108, 95
      %v1119 = vpop.permute.xlu0 %1118
      %1120 = vrot.lane.b32.xlu0 %v1109, 95
      %v1121 = vpop.permute.xlu0 %1120
      %1122 = vrot.lane.b32.xlu0 %v1110, 95
      %v1123 = vpop.permute.xlu0 %1122
      %1124 = vrot.lane.b32.xlu0 %v1111, 95
      %v1125 = vpop.permute.xlu0 %1124
      %1126 = vrot.lane.b32.xlu0 %v1112, 95
      %v1127 = vpop.permute.xlu0 %1126
      %1128 = vrot.lane.b32.xlu0 %v1113, 95
      %v1129 = vpop.permute.xlu0 %1128
      %1130 = vrot.lane.b32.xlu0 %v1114, 95
      %v1131 = vpop.permute.xlu0 %1130
      %1132 = vrot.lane.b32.xlu0 %v1115, 95
      %v1133 = vpop.permute.xlu0 %1132
      %1134 = vrot.lane.b32.xlu0 %v1117, 95
      %v1135 = vpop.permute.xlu0 %1134
      %vm1136 = vcmask 777216
      %v1137 = vsel %vm1136, %v1119, %v1121
      %v1138 = vsel %vm1136, %v1121, %v1123
      %v1139 = vsel %vm1136, %v1123, %v1125
      %v1140 = vsel %vm1136, %v1125, %v1127
      %v1141 = vsel %vm1136, %v1127, %v1129
      %v1142 = vsel %vm1136, %v1129, %v1131
      %v1143 = vsel %vm1136, %v1131, %v1133
      %v1144 = vsel %vm1136, %v1133, %v1135
      %v1146 = vsel %vm228, %v1095, 0
      %v1148 = vsel %vm232, %v1137, 0
      %v1150 = vsel %vm232, %v1138, 0
      %v1152 = vsel %vm232, %v1139, 0
      %v1154 = vsel %vm232, %v1140, 0
      %v1156 = vsel %vm232, %v1141, 0
      %v1158 = vsel %vm232, %v1142, 0
      %v1160 = vsel %vm232, %v1143, 0
      %v1162 = vsel %vm232, %v1144, 0
      %1164 = vmatpush.msra.mxu0 0.0
      %1165 = vmatpush.msra.mxu0 0.0
      %1166 = vmatpush.msra.mxu0 0.0
      %1167 = vmatpush.msra.mxu0 0.0
      %1168 = vmatpush.msra.mxu0 0.0
      %1169 = vmatpush.msra.mxu0 0.0
      %1170 = vmatpush.msra.mxu0 0.0
      %1171 = vmatpush.msra.mxu0 0.0
      %1172 = vmatpush.msra.mxu0 0.0
      %1173 = vmatpush.msra.mxu0 0.0
      %1174 = vmatpush.msra.mxu0 0.0
      %1175 = vmatpush.msra.mxu0 0.0
      %1176 = vmatpush.msra.mxu0 0.0
      %1177 = vmatpush.msra.mxu0 0.0
      %1178 = vmatpush.msra.mxu0 0.0
      %1179 = vmatpush.msra.mxu0 %v1148
      %1180 = vmatmul.f32.gmra.mxu0 %v1146
      %v1181 = vpop.f32.mrf.mxu0
      %v1182 = vadd.f32 0.0, %v1181
      %1183 = vdwg.mxu0
      %1184 = vmatpush.msra.mxu0 0.0
      %1185 = vmatpush.msra.mxu0 0.0
      %1186 = vmatpush.msra.mxu0 0.0
      %1187 = vmatpush.msra.mxu0 0.0
      %1188 = vmatpush.msra.mxu0 0.0
      %1189 = vmatpush.msra.mxu0 0.0
      %1190 = vmatpush.msra.mxu0 0.0
      %1191 = vmatpush.msra.mxu0 0.0
      %1192 = vmatpush.msra.mxu0 0.0
      %1193 = vmatpush.msra.mxu0 0.0
      %1194 = vmatpush.msra.mxu0 0.0
      %1195 = vmatpush.msra.mxu0 0.0
      %1196 = vmatpush.msra.mxu0 0.0
      %1197 = vmatpush.msra.mxu0 0.0
      %1198 = vmatpush.msra.mxu0 0.0
      %1199 = vmatpush.msra.mxu0 %v1150
      %1200 = vmatmul.f32.gmra.mxu0 %v1146
      %v1201 = vpop.f32.mrf.mxu0
      %v1202 = vadd.f32 0.0, %v1201
      %1203 = vdwg.mxu0
      %1204 = vmatpush.msra.mxu0 0.0
      %1205 = vmatpush.msra.mxu0 0.0
      %1206 = vmatpush.msra.mxu0 0.0
      %1207 = vmatpush.msra.mxu0 0.0
      %1208 = vmatpush.msra.mxu0 0.0
      %1209 = vmatpush.msra.mxu0 0.0
      %1210 = vmatpush.msra.mxu0 0.0
      %1211 = vmatpush.msra.mxu0 0.0
      %1212 = vmatpush.msra.mxu0 0.0
      %1213 = vmatpush.msra.mxu0 0.0
      %1214 = vmatpush.msra.mxu0 0.0
      %1215 = vmatpush.msra.mxu0 0.0
      %1216 = vmatpush.msra.mxu0 0.0
      %1217 = vmatpush.msra.mxu0 0.0
      %1218 = vmatpush.msra.mxu0 0.0
      %1219 = vmatpush.msra.mxu0 %v1152
      %1220 = vmatmul.f32.gmra.mxu0 %v1146
      %v1221 = vpop.f32.mrf.mxu0
      %v1222 = vadd.f32 0.0, %v1221
      %1223 = vdwg.mxu0
      %1224 = vmatpush.msra.mxu0 0.0
      %1225 = vmatpush.msra.mxu0 0.0
      %1226 = vmatpush.msra.mxu0 0.0
      %1227 = vmatpush.msra.mxu0 0.0
      %1228 = vmatpush.msra.mxu0 0.0
      %1229 = vmatpush.msra.mxu0 0.0
      %1230 = vmatpush.msra.mxu0 0.0
      %1231 = vmatpush.msra.mxu0 0.0
      %1232 = vmatpush.msra.mxu0 0.0
      %1233 = vmatpush.msra.mxu0 0.0
      %1234 = vmatpush.msra.mxu0 0.0
      %1235 = vmatpush.msra.mxu0 0.0
      %1236 = vmatpush.msra.mxu0 0.0
      %1237 = vmatpush.msra.mxu0 0.0
      %1238 = vmatpush.msra.mxu0 0.0
      %1239 = vmatpush.msra.mxu0 %v1154
      %1240 = vmatmul.f32.gmra.mxu0 %v1146
      %v1241 = vpop.f32.mrf.mxu0
      %v1242 = vadd.f32 0.0, %v1241
      %1243 = vdwg.mxu0
      %1244 = vmatpush.msra.mxu0 0.0
      %1245 = vmatpush.msra.mxu0 0.0
      %1246 = vmatpush.msra.mxu0 0.0
      %1247 = vmatpush.msra.mxu0 0.0
      %1248 = vmatpush.msra.mxu0 0.0
      %1249 = vmatpush.msra.mxu0 0.0
      %1250 = vmatpush.msra.mxu0 0.0
      %1251 = vmatpush.msra.mxu0 0.0
      %1252 = vmatpush.msra.mxu0 0.0
      %1253 = vmatpush.msra.mxu0 0.0
      %1254 = vmatpush.msra.mxu0 0.0
      %1255 = vmatpush.msra.mxu0 0.0
      %1256 = vmatpush.msra.mxu0 0.0
      %1257 = vmatpush.msra.mxu0 0.0
      %1258 = vmatpush.msra.mxu0 0.0
      %1259 = vmatpush.msra.mxu0 %v1156
      %1260 = vmatmul.f32.gmra.mxu0 %v1146
      %v1261 = vpop.f32.mrf.mxu0
      %v1262 = vadd.f32 0.0, %v1261
      %1263 = vdwg.mxu0
      %1264 = vmatpush.msra.mxu0 0.0
      %1265 = vmatpush.msra.mxu0 0.0
      %1266 = vmatpush.msra.mxu0 0.0
      %1267 = vmatpush.msra.mxu0 0.0
      %1268 = vmatpush.msra.mxu0 0.0
      %1269 = vmatpush.msra.mxu0 0.0
      %1270 = vmatpush.msra.mxu0 0.0
      %1271 = vmatpush.msra.mxu0 0.0
      %1272 = vmatpush.msra.mxu0 0.0
      %1273 = vmatpush.msra.mxu0 0.0
      %1274 = vmatpush.msra.mxu0 0.0
      %1275 = vmatpush.msra.mxu0 0.0
      %1276 = vmatpush.msra.mxu0 0.0
      %1277 = vmatpush.msra.mxu0 0.0
      %1278 = vmatpush.msra.mxu0 0.0
      %1279 = vmatpush.msra.mxu0 %v1158
      %1280 = vmatmul.f32.gmra.mxu0 %v1146
      %v1281 = vpop.f32.mrf.mxu0
      %v1282 = vadd.f32 0.0, %v1281
      %1283 = vdwg.mxu0
      %1284 = vmatpush.msra.mxu0 0.0
      %1285 = vmatpush.msra.mxu0 0.0
      %1286 = vmatpush.msra.mxu0 0.0
      %1287 = vmatpush.msra.mxu0 0.0
      %1288 = vmatpush.msra.mxu0 0.0
      %1289 = vmatpush.msra.mxu0 0.0
      %1290 = vmatpush.msra.mxu0 0.0
      %1291 = vmatpush.msra.mxu0 0.0
      %1292 = vmatpush.msra.mxu0 0.0
      %1293 = vmatpush.msra.mxu0 0.0
      %1294 = vmatpush.msra.mxu0 0.0
      %1295 = vmatpush.msra.mxu0 0.0
      %1296 = vmatpush.msra.mxu0 0.0
      %1297 = vmatpush.msra.mxu0 0.0
      %1298 = vmatpush.msra.mxu0 0.0
      %1299 = vmatpush.msra.mxu0 %v1160
      %1300 = vmatmul.f32.gmra.mxu0 %v1146
      %v1301 = vpop.f32.mrf.mxu0
      %v1302 = vadd.f32 0.0, %v1301
      %1303 = vdwg.mxu0
      %1304 = vmatpush.msra.mxu0 0.0
      %1305 = vmatpush.msra.mxu0 0.0
      %1306 = vmatpush.msra.mxu0 0.0
      %1307 = vmatpush.msra.mxu0 0.0
      %1308 = vmatpush.msra.mxu0 0.0
      %1309 = vmatpush.msra.mxu0 0.0
      %1310 = vmatpush.msra.mxu0 0.0
      %1311 = vmatpush.msra.mxu0 0.0
      %1312 = vmatpush.msra.mxu0 0.0
      %1313 = vmatpush.msra.mxu0 0.0
      %1314 = vmatpush.msra.mxu0 0.0
      %1315 = vmatpush.msra.mxu0 0.0
      %1316 = vmatpush.msra.mxu0 0.0
      %1317 = vmatpush.msra.mxu0 0.0
      %1318 = vmatpush.msra.mxu0 0.0
      %1319 = vmatpush.msra.mxu0 %v1162
      %1320 = vmatmul.f32.gmra.mxu0 %v1146
      %v1321 = vpop.f32.mrf.mxu0
      %v1322 = vadd.f32 0.0, %v1321
      %1323 = vdwg.mxu0
      %v1324 = vadd.f32 %v1081, %v1182
      %v1325 = vadd.f32 %v1082, %v1202
      %v1326 = vadd.f32 %v1083, %v1222
      %v1327 = vadd.f32 %v1084, %v1242
      %v1328 = vadd.f32 %v1085, %v1262
      %v1329 = vadd.f32 %v1086, %v1282
      %v1330 = vadd.f32 %v1087, %v1302
      %v1331 = vadd.f32 %v1088, %v1322
      %v1332 = vld [vmem:[%s165] sm:$0x77]
      %v1333 = vld [vmem:[%s165 + $0x8] sm:$0x77]
      %v1334 = vld [vmem:[%s165 + $0x10] sm:$0x77]
      %v1335 = vld [vmem:[%s165 + $0x18] sm:$0x77]
      %v1336 = vld [vmem:[%s165 + $0x20] sm:$0x7]
      %s1337 = scalar_lea.vmem %s1, 40
      %v1338 = vld [vmem:[%s1337] sm:$0xff]
      %1344 = vst [vmem:[#allocation1] ss:$2 sm:$0xff] %v1332
      %s1345 = scalar_lea.vmem [#allocation1], 16
      %1346 = vst [vmem:[%s1345] ss:$2 sm:$0xff] %v1333
      %s1347 = scalar_lea.vmem [#allocation1], 32
      %1348 = vst [vmem:[%s1347] ss:$2 sm:$0xff] %v1334
      %s1349 = scalar_lea.vmem [#allocation1], 48
      %1350 = vst [vmem:[%s1349] ss:$2 sm:$0xff] %v1335
      %v1351 = vld.sshfl [vmem:[#allocation1] sm:$0xff pattern:$0x75316420]
      %v1352 = vld.sshfl [vmem:[#allocation1 + $0x8] sm:$0xff pattern:$0x75316420]
      %v1353 = vld.sshfl [vmem:[#allocation1 + $0x10] sm:$0xff pattern:$0x75316420]
      %v1354 = vld.sshfl [vmem:[#allocation1 + $0x18] sm:$0xff pattern:$0x75316420]
      %v1355 = vld.sshfl [vmem:[#allocation1 + $0x20] sm:$0xff pattern:$0x75316420]
      %v1356 = vld.sshfl [vmem:[#allocation1 + $0x28] sm:$0xff pattern:$0x75316420]
      %v1357 = vld.sshfl [vmem:[#allocation1 + $0x30] sm:$0xff pattern:$0x75316420]
      %v1358 = vld.sshfl [vmem:[#allocation1 + $0x38] sm:$0xff pattern:$0x75316420]
      %1359 = vst [vmem:[#allocation1] ss:$2 sm:$0xff] %v1336
      %v1360 = vld.sshfl [vmem:[#allocation1] sm:$0xff pattern:$0x75316420]
      %1361 = vrot.lane.b32.xlu0 %v1351, 94
      %v1362 = vpop.permute.xlu0 %1361
      %1363 = vrot.lane.b32.xlu0 %v1352, 94
      %v1364 = vpop.permute.xlu0 %1363
      %1365 = vrot.lane.b32.xlu0 %v1353, 94
      %v1366 = vpop.permute.xlu0 %1365
      %1367 = vrot.lane.b32.xlu0 %v1354, 94
      %v1368 = vpop.permute.xlu0 %1367
      %1369 = vrot.lane.b32.xlu0 %v1355, 94
      %v1370 = vpop.permute.xlu0 %1369
      %1371 = vrot.lane.b32.xlu0 %v1356, 94
      %v1372 = vpop.permute.xlu0 %1371
      %1373 = vrot.lane.b32.xlu0 %v1357, 94
      %v1374 = vpop.permute.xlu0 %1373
      %1375 = vrot.lane.b32.xlu0 %v1358, 94
      %v1376 = vpop.permute.xlu0 %1375
      %1377 = vrot.lane.b32.xlu0 %v1360, 94
      %v1378 = vpop.permute.xlu0 %1377
      %vm1379 = vcmask 769024
      %v1380 = vsel %vm1379, %v1362, %v1364
      %v1381 = vsel %vm1379, %v1364, %v1366
      %v1382 = vsel %vm1379, %v1366, %v1368
      %v1383 = vsel %vm1379, %v1368, %v1370
      %v1384 = vsel %vm1379, %v1370, %v1372
      %v1385 = vsel %vm1379, %v1372, %v1374
      %v1386 = vsel %vm1379, %v1374, %v1376
      %v1387 = vsel %vm1379, %v1376, %v1378
      %v1389 = vsel %vm228, %v1338, 0
      %v1391 = vsel %vm232, %v1380, 0
      %v1393 = vsel %vm232, %v1381, 0
      %v1395 = vsel %vm232, %v1382, 0
      %v1397 = vsel %vm232, %v1383, 0
      %v1399 = vsel %vm232, %v1384, 0
      %v1401 = vsel %vm232, %v1385, 0
      %v1403 = vsel %vm232, %v1386, 0
      %v1405 = vsel %vm232, %v1387, 0
      %1407 = vmatpush.msra.mxu0 0.0
      %1408 = vmatpush.msra.mxu0 0.0
      %1409 = vmatpush.msra.mxu0 0.0
      %1410 = vmatpush.msra.mxu0 0.0
      %1411 = vmatpush.msra.mxu0 0.0
      %1412 = vmatpush.msra.mxu0 0.0
      %1413 = vmatpush.msra.mxu0 0.0
      %1414 = vmatpush.msra.mxu0 0.0
      %1415 = vmatpush.msra.mxu0 0.0
      %1416 = vmatpush.msra.mxu0 0.0
      %1417 = vmatpush.msra.mxu0 0.0
      %1418 = vmatpush.msra.mxu0 0.0
      %1419 = vmatpush.msra.mxu0 0.0
      %1420 = vmatpush.msra.mxu0 0.0
      %1421 = vmatpush.msra.mxu0 0.0
      %1422 = vmatpush.msra.mxu0 %v1391
      %1423 = vmatmul.f32.gmra.mxu0 %v1389
      %v1424 = vpop.f32.mrf.mxu0
      %v1425 = vadd.f32 0.0, %v1424
      %1426 = vdwg.mxu0
      %1427 = vmatpush.msra.mxu0 0.0
      %1428 = vmatpush.msra.mxu0 0.0
      %1429 = vmatpush.msra.mxu0 0.0
      %1430 = vmatpush.msra.mxu0 0.0
      %1431 = vmatpush.msra.mxu0 0.0
      %1432 = vmatpush.msra.mxu0 0.0
      %1433 = vmatpush.msra.mxu0 0.0
      %1434 = vmatpush.msra.mxu0 0.0
      %1435 = vmatpush.msra.mxu0 0.0
      %1436 = vmatpush.msra.mxu0 0.0
      %1437 = vmatpush.msra.mxu0 0.0
      %1438 = vmatpush.msra.mxu0 0.0
      %1439 = vmatpush.msra.mxu0 0.0
      %1440 = vmatpush.msra.mxu0 0.0
      %1441 = vmatpush.msra.mxu0 0.0
      %1442 = vmatpush.msra.mxu0 %v1393
      %1443 = vmatmul.f32.gmra.mxu0 %v1389
      %v1444 = vpop.f32.mrf.mxu0
      %v1445 = vadd.f32 0.0, %v1444
      %1446 = vdwg.mxu0
      %1447 = vmatpush.msra.mxu0 0.0
      %1448 = vmatpush.msra.mxu0 0.0
      %1449 = vmatpush.msra.mxu0 0.0
      %1450 = vmatpush.msra.mxu0 0.0
      %1451 = vmatpush.msra.mxu0 0.0
      %1452 = vmatpush.msra.mxu0 0.0
      %1453 = vmatpush.msra.mxu0 0.0
      %1454 = vmatpush.msra.mxu0 0.0
      %1455 = vmatpush.msra.mxu0 0.0
      %1456 = vmatpush.msra.mxu0 0.0
      %1457 = vmatpush.msra.mxu0 0.0
      %1458 = vmatpush.msra.mxu0 0.0
      %1459 = vmatpush.msra.mxu0 0.0
      %1460 = vmatpush.msra.mxu0 0.0
      %1461 = vmatpush.msra.mxu0 0.0
      %1462 = vmatpush.msra.mxu0 %v1395
      %1463 = vmatmul.f32.gmra.mxu0 %v1389
      %v1464 = vpop.f32.mrf.mxu0
      %v1465 = vadd.f32 0.0, %v1464
      %1466 = vdwg.mxu0
      %1467 = vmatpush.msra.mxu0 0.0
      %1468 = vmatpush.msra.mxu0 0.0
      %1469 = vmatpush.msra.mxu0 0.0
      %1470 = vmatpush.msra.mxu0 0.0
      %1471 = vmatpush.msra.mxu0 0.0
      %1472 = vmatpush.msra.mxu0 0.0
      %1473 = vmatpush.msra.mxu0 0.0
      %1474 = vmatpush.msra.mxu0 0.0
      %1475 = vmatpush.msra.mxu0 0.0
      %1476 = vmatpush.msra.mxu0 0.0
      %1477 = vmatpush.msra.mxu0 0.0
      %1478 = vmatpush.msra.mxu0 0.0
      %1479 = vmatpush.msra.mxu0 0.0
      %1480 = vmatpush.msra.mxu0 0.0
      %1481 = vmatpush.msra.mxu0 0.0
      %1482 = vmatpush.msra.mxu0 %v1397
      %1483 = vmatmul.f32.gmra.mxu0 %v1389
      %v1484 = vpop.f32.mrf.mxu0
      %v1485 = vadd.f32 0.0, %v1484
      %1486 = vdwg.mxu0
      %1487 = vmatpush.msra.mxu0 0.0
      %1488 = vmatpush.msra.mxu0 0.0
      %1489 = vmatpush.msra.mxu0 0.0
      %1490 = vmatpush.msra.mxu0 0.0
      %1491 = vmatpush.msra.mxu0 0.0
      %1492 = vmatpush.msra.mxu0 0.0
      %1493 = vmatpush.msra.mxu0 0.0
      %1494 = vmatpush.msra.mxu0 0.0
      %1495 = vmatpush.msra.mxu0 0.0
      %1496 = vmatpush.msra.mxu0 0.0
      %1497 = vmatpush.msra.mxu0 0.0
      %1498 = vmatpush.msra.mxu0 0.0
      %1499 = vmatpush.msra.mxu0 0.0
      %1500 = vmatpush.msra.mxu0 0.0
      %1501 = vmatpush.msra.mxu0 0.0
      %1502 = vmatpush.msra.mxu0 %v1399
      %1503 = vmatmul.f32.gmra.mxu0 %v1389
      %v1504 = vpop.f32.mrf.mxu0
      %v1505 = vadd.f32 0.0, %v1504
      %1506 = vdwg.mxu0
      %1507 = vmatpush.msra.mxu0 0.0
      %1508 = vmatpush.msra.mxu0 0.0
      %1509 = vmatpush.msra.mxu0 0.0
      %1510 = vmatpush.msra.mxu0 0.0
      %1511 = vmatpush.msra.mxu0 0.0
      %1512 = vmatpush.msra.mxu0 0.0
      %1513 = vmatpush.msra.mxu0 0.0
      %1514 = vmatpush.msra.mxu0 0.0
      %1515 = vmatpush.msra.mxu0 0.0
      %1516 = vmatpush.msra.mxu0 0.0
      %1517 = vmatpush.msra.mxu0 0.0
      %1518 = vmatpush.msra.mxu0 0.0
      %1519 = vmatpush.msra.mxu0 0.0
      %1520 = vmatpush.msra.mxu0 0.0
      %1521 = vmatpush.msra.mxu0 0.0
      %1522 = vmatpush.msra.mxu0 %v1401
      %1523 = vmatmul.f32.gmra.mxu0 %v1389
      %v1524 = vpop.f32.mrf.mxu0
      %v1525 = vadd.f32 0.0, %v1524
      %1526 = vdwg.mxu0
      %1527 = vmatpush.msra.mxu0 0.0
      %1528 = vmatpush.msra.mxu0 0.0
      %1529 = vmatpush.msra.mxu0 0.0
      %1530 = vmatpush.msra.mxu0 0.0
      %1531 = vmatpush.msra.mxu0 0.0
      %1532 = vmatpush.msra.mxu0 0.0
      %1533 = vmatpush.msra.mxu0 0.0
      %1534 = vmatpush.msra.mxu0 0.0
      %1535 = vmatpush.msra.mxu0 0.0
      %1536 = vmatpush.msra.mxu0 0.0
      %1537 = vmatpush.msra.mxu0 0.0
      %1538 = vmatpush.msra.mxu0 0.0
      %1539 = vmatpush.msra.mxu0 0.0
      %1540 = vmatpush.msra.mxu0 0.0
      %1541 = vmatpush.msra.mxu0 0.0
      %1542 = vmatpush.msra.mxu0 %v1403
      %1543 = vmatmul.f32.gmra.mxu0 %v1389
      %v1544 = vpop.f32.mrf.mxu0
      %v1545 = vadd.f32 0.0, %v1544
      %1546 = vdwg.mxu0
      %1547 = vmatpush.msra.mxu0 0.0
      %1548 = vmatpush.msra.mxu0 0.0
      %1549 = vmatpush.msra.mxu0 0.0
      %1550 = vmatpush.msra.mxu0 0.0
      %1551 = vmatpush.msra.mxu0 0.0
      %1552 = vmatpush.msra.mxu0 0.0
      %1553 = vmatpush.msra.mxu0 0.0
      %1554 = vmatpush.msra.mxu0 0.0
      %1555 = vmatpush.msra.mxu0 0.0
      %1556 = vmatpush.msra.mxu0 0.0
      %1557 = vmatpush.msra.mxu0 0.0
      %1558 = vmatpush.msra.mxu0 0.0
      %1559 = vmatpush.msra.mxu0 0.0
      %1560 = vmatpush.msra.mxu0 0.0
      %1561 = vmatpush.msra.mxu0 0.0
      %1562 = vmatpush.msra.mxu0 %v1405
      %1563 = vmatmul.f32.gmra.mxu0 %v1389
      %v1564 = vpop.f32.mrf.mxu0
      %v1565 = vadd.f32 0.0, %v1564
      %1566 = vdwg.mxu0
      %v1567 = vadd.f32 %v1324, %v1425
      %v1568 = vadd.f32 %v1325, %v1445
      %v1569 = vadd.f32 %v1326, %v1465
      %v1570 = vadd.f32 %v1327, %v1485
      %v1571 = vadd.f32 %v1328, %v1505
      %v1572 = vadd.f32 %v1329, %v1525
      %v1573 = vadd.f32 %v1330, %v1545
      %v1574 = vadd.f32 %v1331, %v1565
      %v1575 = vld [vmem:[%s165] sm:$0x77]
      %v1576 = vld [vmem:[%s165 + $0x8] sm:$0x77]
      %v1577 = vld [vmem:[%s165 + $0x10] sm:$0x77]
      %v1578 = vld [vmem:[%s165 + $0x18] sm:$0x77]
      %v1579 = vld [vmem:[%s165 + $0x20] sm:$0x7]
      %s1580 = scalar_lea.vmem %s1, 48
      %v1581 = vld [vmem:[%s1580] sm:$0xff]
      %1587 = vst [vmem:[#allocation1] ss:$2 sm:$0xff] %v1575
      %s1588 = scalar_lea.vmem [#allocation1], 16
      %1589 = vst [vmem:[%s1588] ss:$2 sm:$0xff] %v1576
      %s1590 = scalar_lea.vmem [#allocation1], 32
      %1591 = vst [vmem:[%s1590] ss:$2 sm:$0xff] %v1577
      %s1592 = scalar_lea.vmem [#allocation1], 48
      %1593 = vst [vmem:[%s1592] ss:$2 sm:$0xff] %v1578
      %v1594 = vld.sshfl [vmem:[#allocation1] sm:$0xff pattern:$0x75316420]
      %v1595 = vld.sshfl [vmem:[#allocation1 + $0x8] sm:$0xff pattern:$0x75316420]
      %v1596 = vld.sshfl [vmem:[#allocation1 + $0x10] sm:$0xff pattern:$0x75316420]
      %v1597 = vld.sshfl [vmem:[#allocation1 + $0x18] sm:$0xff pattern:$0x75316420]
      %v1598 = vld.sshfl [vmem:[#allocation1 + $0x20] sm:$0xff pattern:$0x75316420]
      %v1599 = vld.sshfl [vmem:[#allocation1 + $0x28] sm:$0xff pattern:$0x75316420]
      %v1600 = vld.sshfl [vmem:[#allocation1 + $0x30] sm:$0xff pattern:$0x75316420]
      %v1601 = vld.sshfl [vmem:[#allocation1 + $0x38] sm:$0xff pattern:$0x75316420]
      %1602 = vst [vmem:[#allocation1] ss:$2 sm:$0xff] %v1579
      %v1603 = vld.sshfl [vmem:[#allocation1] sm:$0xff pattern:$0x75316420]
      %1604 = vrot.lane.b32.xlu0 %v1594, 64
      %v1605 = vpop.permute.xlu0 %1604
      %1606 = vrot.lane.b32.xlu0 %v1595, 64
      %v1607 = vpop.permute.xlu0 %1606
      %1608 = vrot.lane.b32.xlu0 %v1596, 64
      %v1609 = vpop.permute.xlu0 %1608
      %1610 = vrot.lane.b32.xlu0 %v1597, 64
      %v1611 = vpop.permute.xlu0 %1610
      %1612 = vrot.lane.b32.xlu0 %v1598, 64
      %v1613 = vpop.permute.xlu0 %1612
      %1614 = vrot.lane.b32.xlu0 %v1599, 64
      %v1615 = vpop.permute.xlu0 %1614
      %1616 = vrot.lane.b32.xlu0 %v1600, 64
      %v1617 = vpop.permute.xlu0 %1616
      %1618 = vrot.lane.b32.xlu0 %v1601, 64
      %v1619 = vpop.permute.xlu0 %1618
      %1620 = vrot.lane.b32.xlu0 %v1603, 64
      %v1621 = vpop.permute.xlu0 %1620
      %vm1622 = vcmask 523264
      %v1623 = vsel %vm1622, %v1605, %v1607
      %v1624 = vsel %vm1622, %v1607, %v1609
      %v1625 = vsel %vm1622, %v1609, %v1611
      %v1626 = vsel %vm1622, %v1611, %v1613
      %v1627 = vsel %vm1622, %v1613, %v1615
      %v1628 = vsel %vm1622, %v1615, %v1617
      %v1629 = vsel %vm1622, %v1617, %v1619
      %v1630 = vsel %vm1622, %v1619, %v1621
      %v1632 = vsel %vm228, %v1581, 0
      %v1634 = vsel %vm232, %v1623, 0
      %v1636 = vsel %vm232, %v1624, 0
      %v1638 = vsel %vm232, %v1625, 0
      %v1640 = vsel %vm232, %v1626, 0
      %v1642 = vsel %vm232, %v1627, 0
      %v1644 = vsel %vm232, %v1628, 0
      %v1646 = vsel %vm232, %v1629, 0
      %v1648 = vsel %vm232, %v1630, 0
      %1650 = vmatpush.msra.mxu0 0.0
      %1651 = vmatpush.msra.mxu0 0.0
      %1652 = vmatpush.msra.mxu0 0.0
      %1653 = vmatpush.msra.mxu0 0.0
      %1654 = vmatpush.msra.mxu0 0.0
      %1655 = vmatpush.msra.mxu0 0.0
      %1656 = vmatpush.msra.mxu0 0.0
      %1657 = vmatpush.msra.mxu0 0.0
      %1658 = vmatpush.msra.mxu0 0.0
      %1659 = vmatpush.msra.mxu0 0.0
      %1660 = vmatpush.msra.mxu0 0.0
      %1661 = vmatpush.msra.mxu0 0.0
      %1662 = vmatpush.msra.mxu0 0.0
      %1663 = vmatpush.msra.mxu0 0.0
      %1664 = vmatpush.msra.mxu0 0.0
      %1665 = vmatpush.msra.mxu0 %v1634
      %1666 = vmatmul.f32.gmra.mxu0 %v1632
      %v1667 = vpop.f32.mrf.mxu0
      %v1668 = vadd.f32 0.0, %v1667
      %1669 = vdwg.mxu0
      %1670 = vmatpush.msra.mxu0 0.0
      %1671 = vmatpush.msra.mxu0 0.0
      %1672 = vmatpush.msra.mxu0 0.0
      %1673 = vmatpush.msra.mxu0 0.0
      %1674 = vmatpush.msra.mxu0 0.0
      %1675 = vmatpush.msra.mxu0 0.0
      %1676 = vmatpush.msra.mxu0 0.0
      %1677 = vmatpush.msra.mxu0 0.0
      %1678 = vmatpush.msra.mxu0 0.0
      %1679 = vmatpush.msra.mxu0 0.0
      %1680 = vmatpush.msra.mxu0 0.0
      %1681 = vmatpush.msra.mxu0 0.0
      %1682 = vmatpush.msra.mxu0 0.0
      %1683 = vmatpush.msra.mxu0 0.0
      %1684 = vmatpush.msra.mxu0 0.0
      %1685 = vmatpush.msra.mxu0 %v1636
      %1686 = vmatmul.f32.gmra.mxu0 %v1632
      %v1687 = vpop.f32.mrf.mxu0
      %v1688 = vadd.f32 0.0, %v1687
      %1689 = vdwg.mxu0
      %1690 = vmatpush.msra.mxu0 0.0
      %1691 = vmatpush.msra.mxu0 0.0
      %1692 = vmatpush.msra.mxu0 0.0
      %1693 = vmatpush.msra.mxu0 0.0
      %1694 = vmatpush.msra.mxu0 0.0
      %1695 = vmatpush.msra.mxu0 0.0
      %1696 = vmatpush.msra.mxu0 0.0
      %1697 = vmatpush.msra.mxu0 0.0
      %1698 = vmatpush.msra.mxu0 0.0
      %1699 = vmatpush.msra.mxu0 0.0
      %1700 = vmatpush.msra.mxu0 0.0
      %1701 = vmatpush.msra.mxu0 0.0
      %1702 = vmatpush.msra.mxu0 0.0
      %1703 = vmatpush.msra.mxu0 0.0
      %1704 = vmatpush.msra.mxu0 0.0
      %1705 = vmatpush.msra.mxu0 %v1638
      %1706 = vmatmul.f32.gmra.mxu0 %v1632
      %v1707 = vpop.f32.mrf.mxu0
      %v1708 = vadd.f32 0.0, %v1707
      %1709 = vdwg.mxu0
      %1710 = vmatpush.msra.mxu0 0.0
      %1711 = vmatpush.msra.mxu0 0.0
      %1712 = vmatpush.msra.mxu0 0.0
      %1713 = vmatpush.msra.mxu0 0.0
      %1714 = vmatpush.msra.mxu0 0.0
      %1715 = vmatpush.msra.mxu0 0.0
      %1716 = vmatpush.msra.mxu0 0.0
      %1717 = vmatpush.msra.mxu0 0.0
      %1718 = vmatpush.msra.mxu0 0.0
      %1719 = vmatpush.msra.mxu0 0.0
      %1720 = vmatpush.msra.mxu0 0.0
      %1721 = vmatpush.msra.mxu0 0.0
      %1722 = vmatpush.msra.mxu0 0.0
      %1723 = vmatpush.msra.mxu0 0.0
      %1724 = vmatpush.msra.mxu0 0.0
      %1725 = vmatpush.msra.mxu0 %v1640
      %1726 = vmatmul.f32.gmra.mxu0 %v1632
      %v1727 = vpop.f32.mrf.mxu0
      %v1728 = vadd.f32 0.0, %v1727
      %1729 = vdwg.mxu0
      %1730 = vmatpush.msra.mxu0 0.0
      %1731 = vmatpush.msra.mxu0 0.0
      %1732 = vmatpush.msra.mxu0 0.0
      %1733 = vmatpush.msra.mxu0 0.0
      %1734 = vmatpush.msra.mxu0 0.0
      %1735 = vmatpush.msra.mxu0 0.0
      %1736 = vmatpush.msra.mxu0 0.0
      %1737 = vmatpush.msra.mxu0 0.0
      %1738 = vmatpush.msra.mxu0 0.0
      %1739 = vmatpush.msra.mxu0 0.0
      %1740 = vmatpush.msra.mxu0 0.0
      %1741 = vmatpush.msra.mxu0 0.0
      %1742 = vmatpush.msra.mxu0 0.0
      %1743 = vmatpush.msra.mxu0 0.0
      %1744 = vmatpush.msra.mxu0 0.0
      %1745 = vmatpush.msra.mxu0 %v1642
      %1746 = vmatmul.f32.gmra.mxu0 %v1632
      %v1747 = vpop.f32.mrf.mxu0
      %v1748 = vadd.f32 0.0, %v1747
      %1749 = vdwg.mxu0
      %1750 = vmatpush.msra.mxu0 0.0
      %1751 = vmatpush.msra.mxu0 0.0
      %1752 = vmatpush.msra.mxu0 0.0
      %1753 = vmatpush.msra.mxu0 0.0
      %1754 = vmatpush.msra.mxu0 0.0
      %1755 = vmatpush.msra.mxu0 0.0
      %1756 = vmatpush.msra.mxu0 0.0
      %1757 = vmatpush.msra.mxu0 0.0
      %1758 = vmatpush.msra.mxu0 0.0
      %1759 = vmatpush.msra.mxu0 0.0
      %1760 = vmatpush.msra.mxu0 0.0
      %1761 = vmatpush.msra.mxu0 0.0
      %1762 = vmatpush.msra.mxu0 0.0
      %1763 = vmatpush.msra.mxu0 0.0
      %1764 = vmatpush.msra.mxu0 0.0
      %1765 = vmatpush.msra.mxu0 %v1644
      %1766 = vmatmul.f32.gmra.mxu0 %v1632
      %v1767 = vpop.f32.mrf.mxu0
      %v1768 = vadd.f32 0.0, %v1767
      %1769 = vdwg.mxu0
      %1770 = vmatpush.msra.mxu0 0.0
      %1771 = vmatpush.msra.mxu0 0.0
      %1772 = vmatpush.msra.mxu0 0.0
      %1773 = vmatpush.msra.mxu0 0.0
      %1774 = vmatpush.msra.mxu0 0.0
      %1775 = vmatpush.msra.mxu0 0.0
      %1776 = vmatpush.msra.mxu0 0.0
      %1777 = vmatpush.msra.mxu0 0.0
      %1778 = vmatpush.msra.mxu0 0.0
      %1779 = vmatpush.msra.mxu0 0.0
      %1780 = vmatpush.msra.mxu0 0.0
      %1781 = vmatpush.msra.mxu0 0.0
      %1782 = vmatpush.msra.mxu0 0.0
      %1783 = vmatpush.msra.mxu0 0.0
      %1784 = vmatpush.msra.mxu0 0.0
      %1785 = vmatpush.msra.mxu0 %v1646
      %1786 = vmatmul.f32.gmra.mxu0 %v1632
      %v1787 = vpop.f32.mrf.mxu0
      %v1788 = vadd.f32 0.0, %v1787
      %1789 = vdwg.mxu0
      %1790 = vmatpush.msra.mxu0 0.0
      %1791 = vmatpush.msra.mxu0 0.0
      %1792 = vmatpush.msra.mxu0 0.0
      %1793 = vmatpush.msra.mxu0 0.0
      %1794 = vmatpush.msra.mxu0 0.0
      %1795 = vmatpush.msra.mxu0 0.0
      %1796 = vmatpush.msra.mxu0 0.0
      %1797 = vmatpush.msra.mxu0 0.0
      %1798 = vmatpush.msra.mxu0 0.0
      %1799 = vmatpush.msra.mxu0 0.0
      %1800 = vmatpush.msra.mxu0 0.0
      %1801 = vmatpush.msra.mxu0 0.0
      %1802 = vmatpush.msra.mxu0 0.0
      %1803 = vmatpush.msra.mxu0 0.0
      %1804 = vmatpush.msra.mxu0 0.0
      %1805 = vmatpush.msra.mxu0 %v1648
      %1806 = vmatmul.f32.gmra.mxu0 %v1632
      %v1807 = vpop.f32.mrf.mxu0
      %v1808 = vadd.f32 0.0, %v1807
      %1809 = vdwg.mxu0
      %v1810 = vadd.f32 %v1567, %v1668
      %v1811 = vadd.f32 %v1568, %v1688
      %v1812 = vadd.f32 %v1569, %v1708
      %v1813 = vadd.f32 %v1570, %v1728
      %v1814 = vadd.f32 %v1571, %v1748
      %v1815 = vadd.f32 %v1572, %v1768
      %v1816 = vadd.f32 %v1573, %v1788
      %v1817 = vadd.f32 %v1574, %v1808
      %v1818 = vld [vmem:[%s165] sm:$0x77]
      %v1819 = vld [vmem:[%s165 + $0x8] sm:$0x77]
      %v1820 = vld [vmem:[%s165 + $0x10] sm:$0x77]
      %v1821 = vld [vmem:[%s165 + $0x18] sm:$0x77]
      %v1822 = vld [vmem:[%s165 + $0x20] sm:$0x7]
      %s1823 = scalar_lea.vmem %s1, 56
      %v1824 = vld [vmem:[%s1823] sm:$0xff]
      %1830 = vst [vmem:[#allocation1] ss:$2 sm:$0xff] %v1818
      %s1831 = scalar_lea.vmem [#allocation1], 16
      %1832 = vst [vmem:[%s1831] ss:$2 sm:$0xff] %v1819
      %s1833 = scalar_lea.vmem [#allocation1], 32
      %1834 = vst [vmem:[%s1833] ss:$2 sm:$0xff] %v1820
      %s1835 = scalar_lea.vmem [#allocation1], 48
      %1836 = vst [vmem:[%s1835] ss:$2 sm:$0xff] %v1821
      %v1837 = vld.sshfl [vmem:[#allocation1] sm:$0xff pattern:$0x75316420]
      %v1838 = vld.sshfl [vmem:[#allocation1 + $0x8] sm:$0xff pattern:$0x75316420]
      %v1839 = vld.sshfl [vmem:[#allocation1 + $0x10] sm:$0xff pattern:$0x75316420]
      %v1840 = vld.sshfl [vmem:[#allocation1 + $0x18] sm:$0xff pattern:$0x75316420]
      %v1841 = vld.sshfl [vmem:[#allocation1 + $0x20] sm:$0xff pattern:$0x75316420]
      %v1842 = vld.sshfl [vmem:[#allocation1 + $0x28] sm:$0xff pattern:$0x75316420]
      %v1843 = vld.sshfl [vmem:[#allocation1 + $0x30] sm:$0xff pattern:$0x75316420]
      %v1844 = vld.sshfl [vmem:[#allocation1 + $0x38] sm:$0xff pattern:$0x75316420]
      %1845 = vst [vmem:[#allocation1] ss:$2 sm:$0xff] %v1822
      %v1846 = vld.sshfl [vmem:[#allocation1] sm:$0xff pattern:$0x75316420]
      %1847 = vrot.lane.b32.xlu0 %v1837, 63
      %v1848 = vpop.permute.xlu0 %1847
      %1849 = vrot.lane.b32.xlu0 %v1838, 63
      %v1850 = vpop.permute.xlu0 %1849
      %1851 = vrot.lane.b32.xlu0 %v1839, 63
      %v1852 = vpop.permute.xlu0 %1851
      %1853 = vrot.lane.b32.xlu0 %v1840, 63
      %v1854 = vpop.permute.xlu0 %1853
      %1855 = vrot.lane.b32.xlu0 %v1841, 63
      %v1856 = vpop.permute.xlu0 %1855
      %1857 = vrot.lane.b32.xlu0 %v1842, 63
      %v1858 = vpop.permute.xlu0 %1857
      %1859 = vrot.lane.b32.xlu0 %v1843, 63
      %v1860 = vpop.permute.xlu0 %1859
      %1861 = vrot.lane.b32.xlu0 %v1844, 63
      %v1862 = vpop.permute.xlu0 %1861
      %1863 = vrot.lane.b32.xlu0 %v1846, 63
      %v1864 = vpop.permute.xlu0 %1863
      %vm1865 = vcmask 515072
      %v1866 = vsel %vm1865, %v1848, %v1850
      %v1867 = vsel %vm1865, %v1850, %v1852
      %v1868 = vsel %vm1865, %v1852, %v1854
      %v1869 = vsel %vm1865, %v1854, %v1856
      %v1870 = vsel %vm1865, %v1856, %v1858
      %v1871 = vsel %vm1865, %v1858, %v1860
      %v1872 = vsel %vm1865, %v1860, %v1862
      %v1873 = vsel %vm1865, %v1862, %v1864
      %v1875 = vsel %vm228, %v1824, 0
      %v1877 = vsel %vm232, %v1866, 0
      %v1879 = vsel %vm232, %v1867, 0
      %v1881 = vsel %vm232, %v1868, 0
      %v1883 = vsel %vm232, %v1869, 0
      %v1885 = vsel %vm232, %v1870, 0
      %v1887 = vsel %vm232, %v1871, 0
      %v1889 = vsel %vm232, %v1872, 0
      %v1891 = vsel %vm232, %v1873, 0
      %1893 = vmatpush.msra.mxu0 0.0
      %1894 = vmatpush.msra.mxu0 0.0
      %1895 = vmatpush.msra.mxu0 0.0
      %1896 = vmatpush.msra.mxu0 0.0
      %1897 = vmatpush.msra.mxu0 0.0
      %1898 = vmatpush.msra.mxu0 0.0
      %1899 = vmatpush.msra.mxu0 0.0
      %1900 = vmatpush.msra.mxu0 0.0
      %1901 = vmatpush.msra.mxu0 0.0
      %1902 = vmatpush.msra.mxu0 0.0
      %1903 = vmatpush.msra.mxu0 0.0
      %1904 = vmatpush.msra.mxu0 0.0
      %1905 = vmatpush.msra.mxu0 0.0
      %1906 = vmatpush.msra.mxu0 0.0
      %1907 = vmatpush.msra.mxu0 0.0
      %1908 = vmatpush.msra.mxu0 %v1877
      %1909 = vmatmul.f32.gmra.mxu0 %v1875
      %v1910 = vpop.f32.mrf.mxu0
      %v1911 = vadd.f32 0.0, %v1910
      %1912 = vdwg.mxu0
      %1913 = vmatpush.msra.mxu0 0.0
      %1914 = vmatpush.msra.mxu0 0.0
      %1915 = vmatpush.msra.mxu0 0.0
      %1916 = vmatpush.msra.mxu0 0.0
      %1917 = vmatpush.msra.mxu0 0.0
      %1918 = vmatpush.msra.mxu0 0.0
      %1919 = vmatpush.msra.mxu0 0.0
      %1920 = vmatpush.msra.mxu0 0.0
      %1921 = vmatpush.msra.mxu0 0.0
      %1922 = vmatpush.msra.mxu0 0.0
      %1923 = vmatpush.msra.mxu0 0.0
      %1924 = vmatpush.msra.mxu0 0.0
      %1925 = vmatpush.msra.mxu0 0.0
      %1926 = vmatpush.msra.mxu0 0.0
      %1927 = vmatpush.msra.mxu0 0.0
      %1928 = vmatpush.msra.mxu0 %v1879
      %1929 = vmatmul.f32.gmra.mxu0 %v1875
      %v1930 = vpop.f32.mrf.mxu0
      %v1931 = vadd.f32 0.0, %v1930
      %1932 = vdwg.mxu0
      %1933 = vmatpush.msra.mxu0 0.0
      %1934 = vmatpush.msra.mxu0 0.0
      %1935 = vmatpush.msra.mxu0 0.0
      %1936 = vmatpush.msra.mxu0 0.0
      %1937 = vmatpush.msra.mxu0 0.0
      %1938 = vmatpush.msra.mxu0 0.0
      %1939 = vmatpush.msra.mxu0 0.0
      %1940 = vmatpush.msra.mxu0 0.0
      %1941 = vmatpush.msra.mxu0 0.0
      %1942 = vmatpush.msra.mxu0 0.0
      %1943 = vmatpush.msra.mxu0 0.0
      %1944 = vmatpush.msra.mxu0 0.0
      %1945 = vmatpush.msra.mxu0 0.0
      %1946 = vmatpush.msra.mxu0 0.0
      %1947 = vmatpush.msra.mxu0 0.0
      %1948 = vmatpush.msra.mxu0 %v1881
      %1949 = vmatmul.f32.gmra.mxu0 %v1875
      %v1950 = vpop.f32.mrf.mxu0
      %v1951 = vadd.f32 0.0, %v1950
      %1952 = vdwg.mxu0
      %1953 = vmatpush.msra.mxu0 0.0
      %1954 = vmatpush.msra.mxu0 0.0
      %1955 = vmatpush.msra.mxu0 0.0
      %1956 = vmatpush.msra.mxu0 0.0
      %1957 = vmatpush.msra.mxu0 0.0
      %1958 = vmatpush.msra.mxu0 0.0
      %1959 = vmatpush.msra.mxu0 0.0
      %1960 = vmatpush.msra.mxu0 0.0
      %1961 = vmatpush.msra.mxu0 0.0
      %1962 = vmatpush.msra.mxu0 0.0
      %1963 = vmatpush.msra.mxu0 0.0
      %1964 = vmatpush.msra.mxu0 0.0
      %1965 = vmatpush.msra.mxu0 0.0
      %1966 = vmatpush.msra.mxu0 0.0
      %1967 = vmatpush.msra.mxu0 0.0
      %1968 = vmatpush.msra.mxu0 %v1883
      %1969 = vmatmul.f32.gmra.mxu0 %v1875
      %v1970 = vpop.f32.mrf.mxu0
      %v1971 = vadd.f32 0.0, %v1970
      %1972 = vdwg.mxu0
      %1973 = vmatpush.msra.mxu0 0.0
      %1974 = vmatpush.msra.mxu0 0.0
      %1975 = vmatpush.msra.mxu0 0.0
      %1976 = vmatpush.msra.mxu0 0.0
      %1977 = vmatpush.msra.mxu0 0.0
      %1978 = vmatpush.msra.mxu0 0.0
      %1979 = vmatpush.msra.mxu0 0.0
      %1980 = vmatpush.msra.mxu0 0.0
      %1981 = vmatpush.msra.mxu0 0.0
      %1982 = vmatpush.msra.mxu0 0.0
      %1983 = vmatpush.msra.mxu0 0.0
      %1984 = vmatpush.msra.mxu0 0.0
      %1985 = vmatpush.msra.mxu0 0.0
      %1986 = vmatpush.msra.mxu0 0.0
      %1987 = vmatpush.msra.mxu0 0.0
      %1988 = vmatpush.msra.mxu0 %v1885
      %1989 = vmatmul.f32.gmra.mxu0 %v1875
      %v1990 = vpop.f32.mrf.mxu0
      %v1991 = vadd.f32 0.0, %v1990
      %1992 = vdwg.mxu0
      %1993 = vmatpush.msra.mxu0 0.0
      %1994 = vmatpush.msra.mxu0 0.0
      %1995 = vmatpush.msra.mxu0 0.0
      %1996 = vmatpush.msra.mxu0 0.0
      %1997 = vmatpush.msra.mxu0 0.0
      %1998 = vmatpush.msra.mxu0 0.0
      %1999 = vmatpush.msra.mxu0 0.0
      %2000 = vmatpush.msra.mxu0 0.0
      %2001 = vmatpush.msra.mxu0 0.0
      %2002 = vmatpush.msra.mxu0 0.0
      %2003 = vmatpush.msra.mxu0 0.0
      %2004 = vmatpush.msra.mxu0 0.0
      %2005 = vmatpush.msra.mxu0 0.0
      %2006 = vmatpush.msra.mxu0 0.0
      %2007 = vmatpush.msra.mxu0 0.0
      %2008 = vmatpush.msra.mxu0 %v1887
      %2009 = vmatmul.f32.gmra.mxu0 %v1875
      %v2010 = vpop.f32.mrf.mxu0
      %v2011 = vadd.f32 0.0, %v2010
      %2012 = vdwg.mxu0
      %2013 = vmatpush.msra.mxu0 0.0
      %2014 = vmatpush.msra.mxu0 0.0
      %2015 = vmatpush.msra.mxu0 0.0
      %2016 = vmatpush.msra.mxu0 0.0
      %2017 = vmatpush.msra.mxu0 0.0
      %2018 = vmatpush.msra.mxu0 0.0
      %2019 = vmatpush.msra.mxu0 0.0
      %2020 = vmatpush.msra.mxu0 0.0
      %2021 = vmatpush.msra.mxu0 0.0
      %2022 = vmatpush.msra.mxu0 0.0
      %2023 = vmatpush.msra.mxu0 0.0
      %2024 = vmatpush.msra.mxu0 0.0
      %2025 = vmatpush.msra.mxu0 0.0
      %2026 = vmatpush.msra.mxu0 0.0
      %2027 = vmatpush.msra.mxu0 0.0
      %2028 = vmatpush.msra.mxu0 %v1889
      %2029 = vmatmul.f32.gmra.mxu0 %v1875
      %v2030 = vpop.f32.mrf.mxu0
      %v2031 = vadd.f32 0.0, %v2030
      %2032 = vdwg.mxu0
      %2033 = vmatpush.msra.mxu0 0.0
      %2034 = vmatpush.msra.mxu0 0.0
      %2035 = vmatpush.msra.mxu0 0.0
      %2036 = vmatpush.msra.mxu0 0.0
      %2037 = vmatpush.msra.mxu0 0.0
      %2038 = vmatpush.msra.mxu0 0.0
      %2039 = vmatpush.msra.mxu0 0.0
      %2040 = vmatpush.msra.mxu0 0.0
      %2041 = vmatpush.msra.mxu0 0.0
      %2042 = vmatpush.msra.mxu0 0.0
      %2043 = vmatpush.msra.mxu0 0.0
      %2044 = vmatpush.msra.mxu0 0.0
      %2045 = vmatpush.msra.mxu0 0.0
      %2046 = vmatpush.msra.mxu0 0.0
      %2047 = vmatpush.msra.mxu0 0.0
      %2048 = vmatpush.msra.mxu0 %v1891
      %2049 = vmatmul.f32.gmra.mxu0 %v1875
      %v2050 = vpop.f32.mrf.mxu0
      %v2051 = vadd.f32 0.0, %v2050
      %2052 = vdwg.mxu0
      %v2053 = vadd.f32 %v1810, %v1911
      %v2054 = vadd.f32 %v1811, %v1931
      %v2055 = vadd.f32 %v1812, %v1951
      %v2056 = vadd.f32 %v1813, %v1971
      %v2057 = vadd.f32 %v1814, %v1991
      %v2058 = vadd.f32 %v1815, %v2011
      %v2059 = vadd.f32 %v1816, %v2031
      %v2060 = vadd.f32 %v1817, %v2051
      %v2061 = vld [vmem:[%s165] sm:$0x77]
      %v2062 = vld [vmem:[%s165 + $0x8] sm:$0x77]
      %v2063 = vld [vmem:[%s165 + $0x10] sm:$0x77]
      %v2064 = vld [vmem:[%s165 + $0x18] sm:$0x77]
      %v2065 = vld [vmem:[%s165 + $0x20] sm:$0x7]
      %s2066 = scalar_lea.vmem %s1, 64
      %v2067 = vld [vmem:[%s2066] sm:$0xff]
      %2073 = vst [vmem:[#allocation1] ss:$2 sm:$0xff] %v2061
      %s2074 = scalar_lea.vmem [#allocation1], 16
      %2075 = vst [vmem:[%s2074] ss:$2 sm:$0xff] %v2062
      %s2076 = scalar_lea.vmem [#allocation1], 32
      %2077 = vst [vmem:[%s2076] ss:$2 sm:$0xff] %v2063
      %s2078 = scalar_lea.vmem [#allocation1], 48
      %2079 = vst [vmem:[%s2078] ss:$2 sm:$0xff] %v2064
      %v2080 = vld.sshfl [vmem:[#allocation1] sm:$0xff pattern:$0x75316420]
      %v2081 = vld.sshfl [vmem:[#allocation1 + $0x8] sm:$0xff pattern:$0x75316420]
      %v2082 = vld.sshfl [vmem:[#allocation1 + $0x10] sm:$0xff pattern:$0x75316420]
      %v2083 = vld.sshfl [vmem:[#allocation1 + $0x18] sm:$0xff pattern:$0x75316420]
      %v2084 = vld.sshfl [vmem:[#allocation1 + $0x20] sm:$0xff pattern:$0x75316420]
      %v2085 = vld.sshfl [vmem:[#allocation1 + $0x28] sm:$0xff pattern:$0x75316420]
      %v2086 = vld.sshfl [vmem:[#allocation1 + $0x30] sm:$0xff pattern:$0x75316420]
      %v2087 = vld.sshfl [vmem:[#allocation1 + $0x38] sm:$0xff pattern:$0x75316420]
      %2088 = vst [vmem:[#allocation1] ss:$2 sm:$0xff] %v2065
      %v2089 = vld.sshfl [vmem:[#allocation1] sm:$0xff pattern:$0x75316420]
      %2090 = vrot.lane.b32.xlu0 %v2080, 62
      %v2091 = vpop.permute.xlu0 %2090
      %2092 = vrot.lane.b32.xlu0 %v2081, 62
      %v2093 = vpop.permute.xlu0 %2092
      %2094 = vrot.lane.b32.xlu0 %v2082, 62
      %v2095 = vpop.permute.xlu0 %2094
      %2096 = vrot.lane.b32.xlu0 %v2083, 62
      %v2097 = vpop.permute.xlu0 %2096
      %2098 = vrot.lane.b32.xlu0 %v2084, 62
      %v2099 = vpop.permute.xlu0 %2098
      %2100 = vrot.lane.b32.xlu0 %v2085, 62
      %v2101 = vpop.permute.xlu0 %2100
      %2102 = vrot.lane.b32.xlu0 %v2086, 62
      %v2103 = vpop.permute.xlu0 %2102
      %2104 = vrot.lane.b32.xlu0 %v2087, 62
      %v2105 = vpop.permute.xlu0 %2104
      %2106 = vrot.lane.b32.xlu0 %v2089, 62
      %v2107 = vpop.permute.xlu0 %2106
      %vm2108 = vcmask 506880
      %v2109 = vsel %vm2108, %v2091, %v2093
      %v2110 = vsel %vm2108, %v2093, %v2095
      %v2111 = vsel %vm2108, %v2095, %v2097
      %v2112 = vsel %vm2108, %v2097, %v2099
      %v2113 = vsel %vm2108, %v2099, %v2101
      %v2114 = vsel %vm2108, %v2101, %v2103
      %v2115 = vsel %vm2108, %v2103, %v2105
      %v2116 = vsel %vm2108, %v2105, %v2107
      %v2118 = vsel %vm228, %v2067, 0
      %v2120 = vsel %vm232, %v2109, 0
      %v2122 = vsel %vm232, %v2110, 0
      %v2124 = vsel %vm232, %v2111, 0
      %v2126 = vsel %vm232, %v2112, 0
      %v2128 = vsel %vm232, %v2113, 0
      %v2130 = vsel %vm232, %v2114, 0
      %v2132 = vsel %vm232, %v2115, 0
      %v2134 = vsel %vm232, %v2116, 0
      %2136 = vmatpush.msra.mxu0 0.0
      %2137 = vmatpush.msra.mxu0 0.0
      %2138 = vmatpush.msra.mxu0 0.0
      %2139 = vmatpush.msra.mxu0 0.0
      %2140 = vmatpush.msra.mxu0 0.0
      %2141 = vmatpush.msra.mxu0 0.0
      %2142 = vmatpush.msra.mxu0 0.0
      %2143 = vmatpush.msra.mxu0 0.0
      %2144 = vmatpush.msra.mxu0 0.0
      %2145 = vmatpush.msra.mxu0 0.0
      %2146 = vmatpush.msra.mxu0 0.0
      %2147 = vmatpush.msra.mxu0 0.0
      %2148 = vmatpush.msra.mxu0 0.0
      %2149 = vmatpush.msra.mxu0 0.0
      %2150 = vmatpush.msra.mxu0 0.0
      %2151 = vmatpush.msra.mxu0 %v2120
      %2152 = vmatmul.f32.gmra.mxu0 %v2118
      %v2153 = vpop.f32.mrf.mxu0
      %v2154 = vadd.f32 0.0, %v2153
      %2155 = vdwg.mxu0
      %2156 = vmatpush.msra.mxu0 0.0
      %2157 = vmatpush.msra.mxu0 0.0
      %2158 = vmatpush.msra.mxu0 0.0
      %2159 = vmatpush.msra.mxu0 0.0
      %2160 = vmatpush.msra.mxu0 0.0
      %2161 = vmatpush.msra.mxu0 0.0
      %2162 = vmatpush.msra.mxu0 0.0
      %2163 = vmatpush.msra.mxu0 0.0
      %2164 = vmatpush.msra.mxu0 0.0
      %2165 = vmatpush.msra.mxu0 0.0
      %2166 = vmatpush.msra.mxu0 0.0
      %2167 = vmatpush.msra.mxu0 0.0
      %2168 = vmatpush.msra.mxu0 0.0
      %2169 = vmatpush.msra.mxu0 0.0
      %2170 = vmatpush.msra.mxu0 0.0
      %2171 = vmatpush.msra.mxu0 %v2122
      %2172 = vmatmul.f32.gmra.mxu0 %v2118
      %v2173 = vpop.f32.mrf.mxu0
      %v2174 = vadd.f32 0.0, %v2173
      %2175 = vdwg.mxu0
      %2176 = vmatpush.msra.mxu0 0.0
      %2177 = vmatpush.msra.mxu0 0.0
      %2178 = vmatpush.msra.mxu0 0.0
      %2179 = vmatpush.msra.mxu0 0.0
      %2180 = vmatpush.msra.mxu0 0.0
      %2181 = vmatpush.msra.mxu0 0.0
      %2182 = vmatpush.msra.mxu0 0.0
      %2183 = vmatpush.msra.mxu0 0.0
      %2184 = vmatpush.msra.mxu0 0.0
      %2185 = vmatpush.msra.mxu0 0.0
      %2186 = vmatpush.msra.mxu0 0.0
      %2187 = vmatpush.msra.mxu0 0.0
      %2188 = vmatpush.msra.mxu0 0.0
      %2189 = vmatpush.msra.mxu0 0.0
      %2190 = vmatpush.msra.mxu0 0.0
      %2191 = vmatpush.msra.mxu0 %v2124
      %2192 = vmatmul.f32.gmra.mxu0 %v2118
      %v2193 = vpop.f32.mrf.mxu0
      %v2194 = vadd.f32 0.0, %v2193
      %2195 = vdwg.mxu0
      %2196 = vmatpush.msra.mxu0 0.0
      %2197 = vmatpush.msra.mxu0 0.0
      %2198 = vmatpush.msra.mxu0 0.0
      %2199 = vmatpush.msra.mxu0 0.0
      %2200 = vmatpush.msra.mxu0 0.0
      %2201 = vmatpush.msra.mxu0 0.0
      %2202 = vmatpush.msra.mxu0 0.0
      %2203 = vmatpush.msra.mxu0 0.0
      %2204 = vmatpush.msra.mxu0 0.0
      %2205 = vmatpush.msra.mxu0 0.0
      %2206 = vmatpush.msra.mxu0 0.0
      %2207 = vmatpush.msra.mxu0 0.0
      %2208 = vmatpush.msra.mxu0 0.0
      %2209 = vmatpush.msra.mxu0 0.0
      %2210 = vmatpush.msra.mxu0 0.0
      %2211 = vmatpush.msra.mxu0 %v2126
      %2212 = vmatmul.f32.gmra.mxu0 %v2118
      %v2213 = vpop.f32.mrf.mxu0
      %v2214 = vadd.f32 0.0, %v2213
      %2215 = vdwg.mxu0
      %2216 = vmatpush.msra.mxu0 0.0
      %2217 = vmatpush.msra.mxu0 0.0
      %2218 = vmatpush.msra.mxu0 0.0
      %2219 = vmatpush.msra.mxu0 0.0
      %2220 = vmatpush.msra.mxu0 0.0
      %2221 = vmatpush.msra.mxu0 0.0
      %2222 = vmatpush.msra.mxu0 0.0
      %2223 = vmatpush.msra.mxu0 0.0
      %2224 = vmatpush.msra.mxu0 0.0
      %2225 = vmatpush.msra.mxu0 0.0
      %2226 = vmatpush.msra.mxu0 0.0
      %2227 = vmatpush.msra.mxu0 0.0
      %2228 = vmatpush.msra.mxu0 0.0
      %2229 = vmatpush.msra.mxu0 0.0
      %2230 = vmatpush.msra.mxu0 0.0
      %2231 = vmatpush.msra.mxu0 %v2128
      %2232 = vmatmul.f32.gmra.mxu0 %v2118
      %v2233 = vpop.f32.mrf.mxu0
      %v2234 = vadd.f32 0.0, %v2233
      %2235 = vdwg.mxu0
      %2236 = vmatpush.msra.mxu0 0.0
      %2237 = vmatpush.msra.mxu0 0.0
      %2238 = vmatpush.msra.mxu0 0.0
      %2239 = vmatpush.msra.mxu0 0.0
      %2240 = vmatpush.msra.mxu0 0.0
      %2241 = vmatpush.msra.mxu0 0.0
      %2242 = vmatpush.msra.mxu0 0.0
      %2243 = vmatpush.msra.mxu0 0.0
      %2244 = vmatpush.msra.mxu0 0.0
      %2245 = vmatpush.msra.mxu0 0.0
      %2246 = vmatpush.msra.mxu0 0.0
      %2247 = vmatpush.msra.mxu0 0.0
      %2248 = vmatpush.msra.mxu0 0.0
      %2249 = vmatpush.msra.mxu0 0.0
      %2250 = vmatpush.msra.mxu0 0.0
      %2251 = vmatpush.msra.mxu0 %v2130
      %2252 = vmatmul.f32.gmra.mxu0 %v2118
      %v2253 = vpop.f32.mrf.mxu0
      %v2254 = vadd.f32 0.0, %v2253
      %2255 = vdwg.mxu0
      %2256 = vmatpush.msra.mxu0 0.0
      %2257 = vmatpush.msra.mxu0 0.0
      %2258 = vmatpush.msra.mxu0 0.0
      %2259 = vmatpush.msra.mxu0 0.0
      %2260 = vmatpush.msra.mxu0 0.0
      %2261 = vmatpush.msra.mxu0 0.0
      %2262 = vmatpush.msra.mxu0 0.0
      %2263 = vmatpush.msra.mxu0 0.0
      %2264 = vmatpush.msra.mxu0 0.0
      %2265 = vmatpush.msra.mxu0 0.0
      %2266 = vmatpush.msra.mxu0 0.0
      %2267 = vmatpush.msra.mxu0 0.0
      %2268 = vmatpush.msra.mxu0 0.0
      %2269 = vmatpush.msra.mxu0 0.0
      %2270 = vmatpush.msra.mxu0 0.0
      %2271 = vmatpush.msra.mxu0 %v2132
      %2272 = vmatmul.f32.gmra.mxu0 %v2118
      %v2273 = vpop.f32.mrf.mxu0
      %v2274 = vadd.f32 0.0, %v2273
      %2275 = vdwg.mxu0
      %2276 = vmatpush.msra.mxu0 0.0
      %2277 = vmatpush.msra.mxu0 0.0
      %2278 = vmatpush.msra.mxu0 0.0
      %2279 = vmatpush.msra.mxu0 0.0
      %2280 = vmatpush.msra.mxu0 0.0
      %2281 = vmatpush.msra.mxu0 0.0
      %2282 = vmatpush.msra.mxu0 0.0
      %2283 = vmatpush.msra.mxu0 0.0
      %2284 = vmatpush.msra.mxu0 0.0
      %2285 = vmatpush.msra.mxu0 0.0
      %2286 = vmatpush.msra.mxu0 0.0
      %2287 = vmatpush.msra.mxu0 0.0
      %2288 = vmatpush.msra.mxu0 0.0
      %2289 = vmatpush.msra.mxu0 0.0
      %2290 = vmatpush.msra.mxu0 0.0
      %2291 = vmatpush.msra.mxu0 %v2134
      %2292 = vmatmul.f32.gmra.mxu0 %v2118
      %v2293 = vpop.f32.mrf.mxu0
      %v2294 = vadd.f32 0.0, %v2293
      %2295 = vdwg.mxu0
      %v2296 = vadd.f32 %v2053, %v2154
      %v2297 = vadd.f32 %v2054, %v2174
      %v2298 = vadd.f32 %v2055, %v2194
      %v2299 = vadd.f32 %v2056, %v2214
      %v2300 = vadd.f32 %v2057, %v2234
      %v2301 = vadd.f32 %v2058, %v2254
      %v2302 = vadd.f32 %v2059, %v2274
      %v2303 = vadd.f32 %v2060, %v2294
      %v2304 = vld [vmem:[%s2] sm:$0xff]
      %2306 = vset.pattern.permute.xlu0 0
      %2307 = vperm.xlu0 %2306, %v2304
      %v2308 = vpop.permute.xlu0 %2307
      %v2310 = vadd.f32 %v2296, %v2308
      %v2311 = vadd.f32 %v2297, %v2308
      %v2312 = vadd.f32 %v2298, %v2308
      %v2313 = vadd.f32 %v2299, %v2308
      %v2314 = vadd.f32 %v2300, %v2308
      %v2315 = vadd.f32 %v2301, %v2308
      %v2316 = vadd.f32 %v2302, %v2308
      %v2317 = vadd.f32 %v2303, %v2308
      %v2318 = vmax.f32 %v2310, 0.0
      %v2319 = vmax.f32 %v2311, 0.0
      %v2320 = vmax.f32 %v2312, 0.0
      %v2321 = vmax.f32 %v2313, 0.0
      %v2322 = vmax.f32 %v2314, 0.0
      %v2323 = vmax.f32 %v2315, 0.0
      %v2324 = vmax.f32 %v2316, 0.0
      %v2325 = vmax.f32 %v2317, 0.0
      %v2326 = vsub.f32 0.0, %v2318
      %v2327 = vsub.f32 0.0, %v2319
      %v2328 = vsub.f32 0.0, %v2320
      %v2329 = vsub.f32 0.0, %v2321
      %v2330 = vsub.f32 0.0, %v2322
      %v2331 = vsub.f32 0.0, %v2323
      %v2332 = vsub.f32 0.0, %v2324
      %v2333 = vsub.f32 0.0, %v2325
      %v2334 = vmul.f32 %v2326, 1.442695
      %v2335 = vpow.pop %v2334
      %v2336 = vmul.f32 %v2327, 1.442695
      %v2337 = vpow.pop %v2336
      %v2338 = vmul.f32 %v2328, 1.442695
      %v2339 = vpow.pop %v2338
      %v2340 = vmul.f32 %v2329, 1.442695
      %v2341 = vpow.pop %v2340
      %v2342 = vmul.f32 %v2330, 1.442695
      %v2343 = vpow.pop %v2342
      %v2344 = vmul.f32 %v2331, 1.442695
      %v2345 = vpow.pop %v2344
      %v2346 = vmul.f32 %v2332, 1.442695
      %v2347 = vpow.pop %v2346
      %v2348 = vmul.f32 %v2333, 1.442695
      %v2349 = vpow.pop %v2348
      %v2350 = vadd.f32 %v2335, 1.0
      %v2351 = vadd.f32 %v2337, 1.0
      %v2352 = vadd.f32 %v2339, 1.0
      %v2353 = vadd.f32 %v2341, 1.0
      %v2354 = vadd.f32 %v2343, 1.0
      %v2355 = vadd.f32 %v2345, 1.0
      %v2356 = vadd.f32 %v2347, 1.0
      %v2357 = vadd.f32 %v2349, 1.0
      %v2358 = vrcp.pop %v2350
      %v2359 = vmul.f32 %v2350, %v2358
      %v2360 = vsub.f32 1.0, %v2359
      %v2361 = vmul.f32 %v2358, %v2360
      %v2362 = vadd.f32 %v2358, %v2361
      %vm2363 = vweird.f32 %v2350
      %vm2364 = vweird.f32 %v2358
      %vm2365 = vmor %vm2363, %vm2364
      %v2366 = vsel %vm2365, %v2358, %v2362
      %v2367 = vand.u32 2147483647, %v2350
      %vm2368 = vcmp.eq.f32.partialorder %v2367, 8.507059e+37
      %v2369 = vand.u32 %v2350, 2147483648
      %v2370 = vor.u32 1.1754944e-38, %v2369
      %v2371 = vsel %vm2368, %v2370, %v2366
      %v2372 = vrcp.pop %v2351
      %v2373 = vmul.f32 %v2351, %v2372
      %v2374 = vsub.f32 1.0, %v2373
      %v2375 = vmul.f32 %v2372, %v2374
      %v2376 = vadd.f32 %v2372, %v2375
      %vm2377 = vweird.f32 %v2351
      %vm2378 = vweird.f32 %v2372
      %vm2379 = vmor %vm2377, %vm2378
      %v2380 = vsel %vm2379, %v2372, %v2376
      %v2381 = vand.u32 2147483647, %v2351
      %vm2382 = vcmp.eq.f32.partialorder %v2381, 8.507059e+37
      %v2383 = vand.u32 %v2351, 2147483648
      %v2384 = vor.u32 1.1754944e-38, %v2383
      %v2385 = vsel %vm2382, %v2384, %v2380
      %v2386 = vrcp.pop %v2352
      %v2387 = vmul.f32 %v2352, %v2386
      %v2388 = vsub.f32 1.0, %v2387
      %v2389 = vmul.f32 %v2386, %v2388
      %v2390 = vadd.f32 %v2386, %v2389
      %vm2391 = vweird.f32 %v2352
      %vm2392 = vweird.f32 %v2386
      %vm2393 = vmor %vm2391, %vm2392
      %v2394 = vsel %vm2393, %v2386, %v2390
      %v2395 = vand.u32 2147483647, %v2352
      %vm2396 = vcmp.eq.f32.partialorder %v2395, 8.507059e+37
      %v2397 = vand.u32 %v2352, 2147483648
      %v2398 = vor.u32 1.1754944e-38, %v2397
      %v2399 = vsel %vm2396, %v2398, %v2394
      %v2400 = vrcp.pop %v2353
      %v2401 = vmul.f32 %v2353, %v2400
      %v2402 = vsub.f32 1.0, %v2401
      %v2403 = vmul.f32 %v2400, %v2402
      %v2404 = vadd.f32 %v2400, %v2403
      %vm2405 = vweird.f32 %v2353
      %vm2406 = vweird.f32 %v2400
      %vm2407 = vmor %vm2405, %vm2406
      %v2408 = vsel %vm2407, %v2400, %v2404
      %v2409 = vand.u32 2147483647, %v2353
      %vm2410 = vcmp.eq.f32.partialorder %v2409, 8.507059e+37
      %v2411 = vand.u32 %v2353, 2147483648
      %v2412 = vor.u32 1.1754944e-38, %v2411
      %v2413 = vsel %vm2410, %v2412, %v2408
      %v2414 = vrcp.pop %v2354
      %v2415 = vmul.f32 %v2354, %v2414
      %v2416 = vsub.f32 1.0, %v2415
      %v2417 = vmul.f32 %v2414, %v2416
      %v2418 = vadd.f32 %v2414, %v2417
      %vm2419 = vweird.f32 %v2354
      %vm2420 = vweird.f32 %v2414
      %vm2421 = vmor %vm2419, %vm2420
      %v2422 = vsel %vm2421, %v2414, %v2418
      %v2423 = vand.u32 2147483647, %v2354
      %vm2424 = vcmp.eq.f32.partialorder %v2423, 8.507059e+37
      %v2425 = vand.u32 %v2354, 2147483648
      %v2426 = vor.u32 1.1754944e-38, %v2425
      %v2427 = vsel %vm2424, %v2426, %v2422
      %v2428 = vrcp.pop %v2355
      %v2429 = vmul.f32 %v2355, %v2428
      %v2430 = vsub.f32 1.0, %v2429
      %v2431 = vmul.f32 %v2428, %v2430
      %v2432 = vadd.f32 %v2428, %v2431
      %vm2433 = vweird.f32 %v2355
      %vm2434 = vweird.f32 %v2428
      %vm2435 = vmor %vm2433, %vm2434
      %v2436 = vsel %vm2435, %v2428, %v2432
      %v2437 = vand.u32 2147483647, %v2355
      %vm2438 = vcmp.eq.f32.partialorder %v2437, 8.507059e+37
      %v2439 = vand.u32 %v2355, 2147483648
      %v2440 = vor.u32 1.1754944e-38, %v2439
      %v2441 = vsel %vm2438, %v2440, %v2436
      %v2442 = vrcp.pop %v2356
      %v2443 = vmul.f32 %v2356, %v2442
      %v2444 = vsub.f32 1.0, %v2443
      %v2445 = vmul.f32 %v2442, %v2444
      %v2446 = vadd.f32 %v2442, %v2445
      %vm2447 = vweird.f32 %v2356
      %vm2448 = vweird.f32 %v2442
      %vm2449 = vmor %vm2447, %vm2448
      %v2450 = vsel %vm2449, %v2442, %v2446
      %v2451 = vand.u32 2147483647, %v2356
      %vm2452 = vcmp.eq.f32.partialorder %v2451, 8.507059e+37
      %v2453 = vand.u32 %v2356, 2147483648
      %v2454 = vor.u32 1.1754944e-38, %v2453
      %v2455 = vsel %vm2452, %v2454, %v2450
      %v2456 = vrcp.pop %v2357
      %v2457 = vmul.f32 %v2357, %v2456
      %v2458 = vsub.f32 1.0, %v2457
      %v2459 = vmul.f32 %v2456, %v2458
      %v2460 = vadd.f32 %v2456, %v2459
      %vm2461 = vweird.f32 %v2357
      %vm2462 = vweird.f32 %v2456
      %vm2463 = vmor %vm2461, %vm2462
      %v2464 = vsel %vm2463, %v2456, %v2460
      %v2465 = vand.u32 2147483647, %v2357
      %vm2466 = vcmp.eq.f32.partialorder %v2465, 8.507059e+37
      %v2467 = vand.u32 %v2357, 2147483648
      %v2468 = vor.u32 1.1754944e-38, %v2467
      %v2469 = vsel %vm2466, %v2468, %v2464
      %2470 = vst [vmem:[%s170] sm:$0xff] %v2371
      %2471 = vst [vmem:[%s170 + $0x8] sm:$0xff] %v2385
      %2472 = vst [vmem:[%s170 + $0x10] sm:$0xff] %v2399
      %2473 = vst [vmem:[%s170 + $0x18] sm:$0xff] %v2413
      %2474 = vst [vmem:[%s170 + $0x20] sm:$0xff] %v2427
      %2475 = vst [vmem:[%s170 + $0x28] sm:$0xff] %v2441
      %2476 = vst [vmem:[%s170 + $0x30] sm:$0xff] %v2455
      %2477 = vst [vmem:[%s170 + $0x38] sm:$0xff] %v2469
      %p2478 = scmp.lt.s32.totalorder %s14, 1
      %s2479 = scalar_select %p2478, %s14, 1
      %s2480 = smul.addr %s2479, 8
      %s2481 = smul.addr %s2480, 8
      %s2482 = scalar_lea.vmem %s3, %s2481
      // Predicated region
      $region33: #{model_forward.1} parent=31 // pred_check
        %p2483 = pneg %p100
      $region34: #{model_forward.1} parent=31 // pred_check_branch
        %2485 = sbr.rel (%p2483) target = $region36
      $region35: #{model_forward.1} parent=31 // pred_region
        _
      $region36: #{model_forward.1} parent=31 // pred_fallthru
        _
    $region32: #{model_forward.1} parent=5 // pred_fallthru
      _
    %p2486 = scmp.le.s32.totalorder 2, %s9
    // Predicated region
    $region37: #{model_forward.1} parent=5 // pred_check
      %p2487 = pneg %p2486
    $region38: #{model_forward.1} parent=5 // pred_check_branch
      %2489 = sbr.rel (%p2487) target = $region40
    $region39: #{model_forward.1} parent=5 // pred_region
      %s2490 = ssub.s32 %s9, 2
      // Predicated region
      $region41: #{model_forward.1} parent=39 // pred_check
        %p2491 = pneg %p106
      $region42: #{model_forward.1} parent=39 // pred_check_branch
        %2493 = sbr.rel (%p2491) target = $region44
      $region43: #{model_forward.1} parent=39 // pred_region
        %p2494 = scmp.lt.s32.totalorder %s15, 1
        %s2495 = scalar_select %p2494, %s15, 1
        %s2496 = smul.addr %s2495, 8
        %s2497 = smul.addr %s2496, 8
        %s2498 = scalar_lea.vmem %s3, %s2497
      $region44: #{model_forward.1} parent=39 // pred_fallthru
        _
    $region40: #{model_forward.1} parent=5 // pred_fallthru
      _
  $region6: #{model_forward.1} parent=0 // loop_footer
    %s13 = sadd.s32 1, %s9
  $region7: #{model_forward.1} parent=0 // loop_footer_branch
    %8 = sbr.rel target = $region3
  $region8: #{model_forward.1} parent=0 // loop_exit
    _

</llo_original>
